<compile_context>
chip_gen: v7x
topology: tpu7x:2x2x1
jax: 0.10.0
libtpu: 0.0.40
codegen_flags: <defaults>
</compile_context>

<pallas_src>
import jax
import jax.numpy as jnp
from jax.experimental import pallas as pl
from jax.experimental.pallas import tpu as pltpu

NUM_CLASSES = 5
NUM_FRAMES = 8
MOTION_INFO = False
C_HID = 32
FC_HID = 64
BN_EPS = 1e-5
OUT_LANES = 128          # lane-dense output block; logits live in [:, :num_classes]


# ----------------------------- Pallas kernel --------------------------------
def _kcnn_kernel(x_ref, w1_ref, s1_ref, t1_ref, w2_ref, s2_ref, t2_ref,
                 wf1_ref, bf1_ref, wf2_ref, bf2_ref, out_ref,
                 pad1_ref, pad2_ref):
    TB, T, CIN = x_ref.shape
    C = w1_ref.shape[2]
    f32 = jnp.float32

    def conv3(pad_ref, w_ref, cin):
        # conv1d(kernel=3, padding=1) over time == 3 shifted matmuls against a
        # zero-padded time slab; the shifts are static ref slices (no copies).
        prev = pad_ref[:, 0:T, :].reshape(TB * T, cin)
        cur = pad_ref[:, 1:T + 1, :].reshape(TB * T, cin)
        nxt = pad_ref[:, 2:T + 2, :].reshape(TB * T, cin)
        return (jnp.dot(prev, w_ref[0], preferred_element_type=f32)
                + jnp.dot(cur, w_ref[1], preferred_element_type=f32)
                + jnp.dot(nxt, w_ref[2], preferred_element_type=f32))

    # ---- conv1: fill padded slab, matmul, fused bias+BN affine, ReLU --------
    pad1_ref[:, 0:1, :] = jnp.zeros((TB, 1, CIN), f32)
    pad1_ref[:, T + 1:T + 2, :] = jnp.zeros((TB, 1, CIN), f32)
    pad1_ref[:, 1:T + 1, :] = x_ref[...]
    h1 = jnp.maximum(conv3(pad1_ref, w1_ref, CIN) * s1_ref[...] + t1_ref[...], 0.0)

    # ---- conv2 --------------------------------------------------------------
    pad2_ref[:, 0:1, :] = jnp.zeros((TB, 1, C), f32)
    pad2_ref[:, T + 1:T + 2, :] = jnp.zeros((TB, 1, C), f32)
    pad2_ref[:, 1:T + 1, :] = h1.reshape(TB, T, C)
    h2 = jnp.maximum(conv3(pad2_ref, w2_ref, C) * s2_ref[...] + t2_ref[...], 0.0)
    h2_3d = h2.reshape(TB, T, C)

    # ---- fc1 as sum over T of (TB, C) @ (C, H): avoids the lane-crossing
    #      (TB, T*C) flatten; wf1 was pre-split per time step to (T, C, H). ---
    acc = jnp.dot(h2_3d[:, 0, :], wf1_ref[0], preferred_element_type=f32)
    for t in range(1, T):                      # T=8, static unroll
        acc = acc + jnp.dot(h2_3d[:, t, :], wf1_ref[t], preferred_element_type=f32)
    f1 = jnp.maximum(acc + bf1_ref[...], 0.0)

    # ---- fc2: output N padded to 128 lanes so the store is unmasked ---------
    out_ref[...] = jnp.dot(f1, wf2_ref[...], preferred_element_type=f32) + bf2_ref[...]


# ------------------------------ parameters ----------------------------------
def init_params(key, num_classes, num_frames, motion_info=False):
    cin = 34 * 2 if motion_info else 34
    C, H = C_HID, FC_HID
    ks = jax.random.split(key, 16)
    f32 = jnp.float32
    p = {
        "conv1_w": 0.1 * jax.random.normal(ks[0], (C, cin, 3), f32),
        "conv1_b": 0.1 * jax.random.normal(ks[1], (C,), f32),
        "bn1_gamma": 1.0 + 0.1 * jax.random.normal(ks[2], (C,), f32),
        "bn1_beta": 0.1 * jax.random.normal(ks[3], (C,), f32),
        "bn1_mean": 0.1 * jax.random.normal(ks[4], (C,), f32),
        "bn1_var": jnp.abs(jax.random.normal(ks[5], (C,), f32)) + 0.5,
        "conv2_w": 0.1 * jax.random.normal(ks[6], (C, C, 3), f32),
        "conv2_b": 0.1 * jax.random.normal(ks[7], (C,), f32),
        "bn2_gamma": 1.0 + 0.1 * jax.random.normal(ks[8], (C,), f32),
        "bn2_beta": 0.1 * jax.random.normal(ks[9], (C,), f32),
        "bn2_mean": 0.1 * jax.random.normal(ks[10], (C,), f32),
        "bn2_var": jnp.abs(jax.random.normal(ks[11], (C,), f32)) + 0.5,
        "fc1_w": 0.05 * jax.random.normal(ks[12], (H, C * num_frames), f32),
        "fc1_b": 0.05 * jax.random.normal(ks[13], (H,), f32),
        "fc2_w": 0.05 * jax.random.normal(ks[14], (num_classes, H), f32),
        "fc2_b": 0.05 * jax.random.normal(ks[15], (num_classes,), f32),
    }
    return p


def prepare_kernel_params(p, num_frames, num_classes):
    """Parameter glue: layout transposes, BN folding (eval mode), fc2 lane pad."""
    C, H, T = C_HID, FC_HID, num_frames

    def fold_bn(conv_b, gamma, beta, mean, var):
        scale = gamma / jnp.sqrt(var + BN_EPS)
        shift = (conv_b - mean) * scale + beta
        return scale.reshape(1, C), shift.reshape(1, C)

    s1, t1 = fold_bn(p["conv1_b"], p["bn1_gamma"], p["bn1_beta"],
                     p["bn1_mean"], p["bn1_var"])
    s2, t2 = fold_bn(p["conv2_b"], p["bn2_gamma"], p["bn2_beta"],
                     p["bn2_mean"], p["bn2_var"])

    # fc2: pad the N dimension to 128 lanes (zeros) for unmasked output stores.
    wf2 = jnp.zeros((H, OUT_LANES), jnp.float32).at[:, :num_classes].set(p["fc2_w"].T)
    bf2 = jnp.zeros((1, OUT_LANES), jnp.float32).at[:, :num_classes].set(p["fc2_b"])

    kp = {
        # conv weights (Cout, Cin, 3) -> per-tap (3, Cin, Cout)
        "w1": jnp.transpose(p["conv1_w"], (2, 1, 0)),
        "s1": s1, "t1": t1,
        "w2": jnp.transpose(p["conv2_w"], (2, 1, 0)),
        "s2": s2, "t2": t2,
        # fc1: PyTorch flat index c*T + t  ->  per-time-step (T, C, H)
        "wf1": p["fc1_w"].reshape(H, C, T).transpose(2, 1, 0),
        "bf1": p["fc1_b"].reshape(1, H),
        "wf2": wf2, "bf2": bf2,
        "num_classes": num_classes,
    }
    return kp


# ------------------------------- wrapper -------------------------------------
def keypoint_cnn_forward(x_btc, kp, *, batch_tile=512):
    """x_btc: (B, T, Cin) float32 (channels-last).

    Callers holding PyTorch-style NCW (B, Cin, T) data should transpose once
    upstream (where XLA can fuse it with the producing op) — keeping the
    transpose out of this wrapper avoids an extra HBM round-trip of x per call.
    batch_tile defaults keep double-buffered x/out blocks + the padded slabs
    well under v7x's 64 MiB per-core VMEM.
    """
    B, T, CIN = x_btc.shape
    C, H = C_HID, FC_HID
    nc = kp["num_classes"]

    assert batch_tile % 8 == 0, "batch_tile must be a multiple of 8 (sublane)"
    tb = max(8, min(batch_tile, pl.cdiv(B, 8) * 8))
    b_pad = pl.cdiv(B, tb) * tb
    if b_pad != B:
        x_btc = jnp.pad(x_btc, ((0, b_pad - B), (0, 0), (0, 0)))

    def resident(shape):
        n = len(shape)
        return pl.BlockSpec(tuple(shape), lambda b: (0,) * n)

    args = (x_btc.astype(jnp.float32), kp["w1"], kp["s1"], kp["t1"],
            kp["w2"], kp["s2"], kp["t2"], kp["wf1"], kp["bf1"],
            kp["wf2"], kp["bf2"])

    grid_spec = pltpu.PrefetchScalarGridSpec(
        num_scalar_prefetch=0,
        grid=(b_pad // tb,),
        in_specs=[
            pl.BlockSpec((tb, T, CIN), lambda b: (b, 0, 0)),   # x: blocked on batch
            resident(kp["w1"].shape),
            resident(kp["s1"].shape),
            resident(kp["t1"].shape),
            resident(kp["w2"].shape),
            resident(kp["s2"].shape),
            resident(kp["t2"].shape),
            resident(kp["wf1"].shape),
            resident(kp["bf1"].shape),
            resident(kp["wf2"].shape),
            resident(kp["bf2"].shape),
        ],
        out_specs=pl.BlockSpec((tb, OUT_LANES), lambda b: (b, 0)),
        scratch_shapes=[
            pltpu.VMEM((tb, T + 2, CIN), jnp.float32),   # padded conv1 input slab
            pltpu.VMEM((tb, T + 2, C), jnp.float32),     # padded conv2 input slab
        ],
    )

    out = pl.pallas_call(
        _kcnn_kernel,
        out_shape=jax.ShapeDtypeStruct((b_pad, OUT_LANES), jnp.float32),
        grid_spec=grid_spec,
        compiler_params=pltpu.CompilerParams(
            dimension_semantics=("parallel",),
            vmem_limit_bytes=32 * 1024 * 1024,
        ),
    )(*args)
    return out[:B, :nc]


# --------------------------- pure-JAX reference ------------------------------
def ref_forward(x_nct, p):
    def conv1d(x, w, b):
        y = jax.lax.conv_general_dilated(
            x, w, window_strides=(1,), padding=[(1, 1)],
            dimension_numbers=("NCH", "OIH", "NCH"))
        return y + b[None, :, None]

    def bn(x, g, be, m, v):
        return ((x - m[None, :, None]) / jnp.sqrt(v[None, :, None] + BN_EPS)
                * g[None, :, None] + be[None, :, None])

    h = jax.nn.relu(bn(conv1d(x_nct, p["conv1_w"], p["conv1_b"]),
                       p["bn1_gamma"], p["bn1_beta"], p["bn1_mean"], p["bn1_var"]))
    h = jax.nn.relu(bn(conv1d(h, p["conv2_w"], p["conv2_b"]),
                       p["bn2_gamma"], p["bn2_beta"], p["bn2_mean"], p["bn2_var"]))
    flat = h.reshape(h.shape[0], -1)
    f1 = jax.nn.relu(flat @ p["fc1_w"].T + p["fc1_b"])
    return f1 @ p["fc2_w"].T + p["fc2_b"]


# --------------------------------- main --------------------------------------
if __name__ == "__main__":
    key = jax.random.PRNGKey(0)
    k_param, k_x = jax.random.split(key)

    B = 16
    cin = 34 * 2 if MOTION_INFO else 34
    # PyTorch-layout input (B, Cin, T); the kernel consumes channels-last.
    x_nct = jax.random.normal(k_x, (B, cin, NUM_FRAMES), jnp.float32)
    x_btc = jnp.transpose(x_nct, (0, 2, 1))   # done once upstream of the kernel

    params = init_params(k_param, NUM_CLASSES, NUM_FRAMES, MOTION_INFO)
    kparams = prepare_kernel_params(params, NUM_FRAMES, NUM_CLASSES)

    # batch_tile=8 -> grid of 2 steps, exercising the batch pipeline.
    out = jax.block_until_ready(keypoint_cnn_forward(x_btc, kparams, batch_tile=8))

    ref = jax.block_until_ready(ref_forward(x_nct, params))
    assert out.shape == (B, NUM_CLASSES), out.shape
    assert jnp.allclose(out, ref, atol=1e-2, rtol=1e-2), \
        f"max abs diff {jnp.max(jnp.abs(out - ref))}"

    print("KERNEL_OK")
</pallas_src>

<mosaic_0001>
module attributes {stable_mosaic.version = 11 : i64} {
  func.func @_kcnn_kernel(%arg0: i32, %arg1: memref<8x8x34xf32, #tpu.memory_space<vmem>>, %arg2: memref<3x34x32xf32, #tpu.memory_space<vmem>>, %arg3: memref<1x32xf32, #tpu.memory_space<vmem>>, %arg4: memref<1x32xf32, #tpu.memory_space<vmem>>, %arg5: memref<3x32x32xf32, #tpu.memory_space<vmem>>, %arg6: memref<1x32xf32, #tpu.memory_space<vmem>>, %arg7: memref<1x32xf32, #tpu.memory_space<vmem>>, %arg8: memref<8x32x64xf32, #tpu.memory_space<vmem>>, %arg9: memref<1x64xf32, #tpu.memory_space<vmem>>, %arg10: memref<64x128xf32, #tpu.memory_space<vmem>>, %arg11: memref<1x128xf32, #tpu.memory_space<vmem>>, %arg12: memref<8x128xf32, #tpu.memory_space<vmem>>, %arg13: memref<8x10x34xf32, #tpu.memory_space<vmem>>, %arg14: memref<8x10x32xf32, #tpu.memory_space<vmem>>) attributes {dimension_semantics = [#tpu.dimension_semantics<parallel>], iteration_bounds = array<i64: 2>, scalar_prefetch = 0 : i64, scratch_operands = 2 : i64, tpu.core_type = #tpu.core_type<tc>, window_params = [{transform_indices = @transform_0, window_bounds = array<i64: 8, 8, 34>}, {pipeline_mode = #tpu.pipeline_mode<synchronous>, transform_indices = @transform_1, window_bounds = array<i64: 3, 34, 32>}, {pipeline_mode = #tpu.pipeline_mode<synchronous>, transform_indices = @transform_2, window_bounds = array<i64: 1, 32>}, {pipeline_mode = #tpu.pipeline_mode<synchronous>, transform_indices = @transform_3, window_bounds = array<i64: 1, 32>}, {pipeline_mode = #tpu.pipeline_mode<synchronous>, transform_indices = @transform_4, window_bounds = array<i64: 3, 32, 32>}, {pipeline_mode = #tpu.pipeline_mode<synchronous>, transform_indices = @transform_5, window_bounds = array<i64: 1, 32>}, {pipeline_mode = #tpu.pipeline_mode<synchronous>, transform_indices = @transform_6, window_bounds = array<i64: 1, 32>}, {pipeline_mode = #tpu.pipeline_mode<synchronous>, transform_indices = @transform_7, window_bounds = array<i64: 8, 32, 64>}, {pipeline_mode = #tpu.pipeline_mode<synchronous>, transform_indices = @transform_8, window_bounds = array<i64: 1, 64>}, {pipeline_mode = #tpu.pipeline_mode<synchronous>, transform_indices = @transform_9, window_bounds = array<i64: 64, 128>}, {pipeline_mode = #tpu.pipeline_mode<synchronous>, transform_indices = @transform_10, window_bounds = array<i64: 1, 128>}, {transform_indices = @transform_11, window_bounds = array<i64: 8, 128>}]} {
    %cst = arith.constant 0.000000e+00 : f32
    %0 = vector.broadcast %cst : f32 to vector<8x1x34xf32>
    %c0 = arith.constant 0 : index
    %c0_0 = arith.constant 0 : index
    %c0_1 = arith.constant 0 : index
    %1 = vector.load %arg13[%c0, %c0_0, %c0_1] : memref<8x10x34xf32, #tpu.memory_space<vmem>>, vector<8x1x34xf32>
    tpu.vector_store %arg13[%c0, %c0_0, %c0_1], %0 {strides = array<i32>} : memref<8x10x34xf32, #tpu.memory_space<vmem>>, vector<8x1x34xf32>,
    %cst_2 = arith.constant 0.000000e+00 : f32
    %2 = vector.broadcast %cst_2 : f32 to vector<8x1x34xf32>
    %c0_3 = arith.constant 0 : index
    %c9 = arith.constant 9 : index
    %c0_4 = arith.constant 0 : index
    %3 = vector.load %arg13[%c0_3, %c9, %c0_4] : memref<8x10x34xf32, #tpu.memory_space<vmem>>, vector<8x1x34xf32>
    tpu.vector_store %arg13[%c0_3, %c9, %c0_4], %2 {strides = array<i32>} : memref<8x10x34xf32, #tpu.memory_space<vmem>>, vector<8x1x34xf32>,
    %c0_5 = arith.constant 0 : index
    %c0_6 = arith.constant 0 : index
    %c0_7 = arith.constant 0 : index
    %4 = vector.load %arg1[%c0_5, %c0_6, %c0_7] : memref<8x8x34xf32, #tpu.memory_space<vmem>>, vector<8x8x34xf32>
    %c0_8 = arith.constant 0 : index
    %c1 = arith.constant 1 : index
    %c0_9 = arith.constant 0 : index
    %5 = vector.load %arg13[%c0_8, %c1, %c0_9] : memref<8x10x34xf32, #tpu.memory_space<vmem>>, vector<8x8x34xf32>
    tpu.vector_store %arg13[%c0_8, %c1, %c0_9], %4 {strides = array<i32>} : memref<8x10x34xf32, #tpu.memory_space<vmem>>, vector<8x8x34xf32>,
    %c0_10 = arith.constant 0 : index
    %c0_11 = arith.constant 0 : index
    %c0_12 = arith.constant 0 : index
    %6 = vector.load %arg13[%c0_10, %c0_11, %c0_12] : memref<8x10x34xf32, #tpu.memory_space<vmem>>, vector<8x8x34xf32>
    %7 = vector.shape_cast %6 : vector<8x8x34xf32> to vector<64x34xf32>
    %c0_13 = arith.constant 0 : index
    %c1_14 = arith.constant 1 : index
    %c0_15 = arith.constant 0 : index
    %8 = vector.load %arg13[%c0_13, %c1_14, %c0_15] : memref<8x10x34xf32, #tpu.memory_space<vmem>>, vector<8x8x34xf32>
    %9 = vector.shape_cast %8 : vector<8x8x34xf32> to vector<64x34xf32>
    %c0_16 = arith.constant 0 : index
    %c2 = arith.constant 2 : index
    %c0_17 = arith.constant 0 : index
    %10 = vector.load %arg13[%c0_16, %c2, %c0_17] : memref<8x10x34xf32, #tpu.memory_space<vmem>>, vector<8x8x34xf32>
    %11 = vector.shape_cast %10 : vector<8x8x34xf32> to vector<64x34xf32>
    %c0_18 = arith.constant 0 : index
    %c0_19 = arith.constant 0 : index
    %c0_20 = arith.constant 0 : index
    %12 = vector.load %arg2[%c0_18, %c0_19, %c0_20] : memref<3x34x32xf32, #tpu.memory_space<vmem>>, vector<1x34x32xf32>
    %13 = vector.shape_cast %12 : vector<1x34x32xf32> to vector<34x32xf32>
    %cst_21 = arith.constant dense<0.000000e+00> : vector<64x32xf32>
    %14 = tpu.matmul %7, %13, %cst_21 {dimension_numbers = #tpu.dot_dimension_numbers<[1], [0], [0], [1], [0, 0, 1, 1], [], []>} : vector<64x34xf32>, vector<34x32xf32>, vector<64x32xf32> -> vector<64x32xf32>
    %c1_22 = arith.constant 1 : index
    %c0_23 = arith.constant 0 : index
    %c0_24 = arith.constant 0 : index
    %15 = vector.load %arg2[%c1_22, %c0_23, %c0_24] : memref<3x34x32xf32, #tpu.memory_space<vmem>>, vector<1x34x32xf32>
    %16 = vector.shape_cast %15 : vector<1x34x32xf32> to vector<34x32xf32>
    %cst_25 = arith.constant dense<0.000000e+00> : vector<64x32xf32>
    %17 = tpu.matmul %9, %16, %cst_25 {dimension_numbers = #tpu.dot_dimension_numbers<[1], [0], [0], [1], [0, 0, 1, 1], [], []>} : vector<64x34xf32>, vector<34x32xf32>, vector<64x32xf32> -> vector<64x32xf32>
    %18 = arith.addf %14, %17 : vector<64x32xf32>
    %c2_26 = arith.constant 2 : index
    %c0_27 = arith.constant 0 : index
    %c0_28 = arith.constant 0 : index
    %19 = vector.load %arg2[%c2_26, %c0_27, %c0_28] : memref<3x34x32xf32, #tpu.memory_space<vmem>>, vector<1x34x32xf32>
    %20 = vector.shape_cast %19 : vector<1x34x32xf32> to vector<34x32xf32>
    %cst_29 = arith.constant dense<0.000000e+00> : vector<64x32xf32>
    %21 = tpu.matmul %11, %20, %cst_29 {dimension_numbers = #tpu.dot_dimension_numbers<[1], [0], [0], [1], [0, 0, 1, 1], [], []>} : vector<64x34xf32>, vector<34x32xf32>, vector<64x32xf32> -> vector<64x32xf32>
    %22 = arith.addf %18, %21 : vector<64x32xf32>
    %c0_30 = arith.constant 0 : index
    %c0_31 = arith.constant 0 : index
    %23 = vector.load %arg3[%c0_30, %c0_31] : memref<1x32xf32, #tpu.memory_space<vmem>>, vector<1x32xf32>
    %24 = vector.broadcast %23 : vector<1x32xf32> to vector<64x32xf32>
    %25 = arith.mulf %22, %24 : vector<64x32xf32>
    %c0_32 = arith.constant 0 : index
    %c0_33 = arith.constant 0 : index
    %26 = vector.load %arg4[%c0_32, %c0_33] : memref<1x32xf32, #tpu.memory_space<vmem>>, vector<1x32xf32>
    %27 = vector.broadcast %26 : vector<1x32xf32> to vector<64x32xf32>
    %28 = arith.addf %25, %27 : vector<64x32xf32>
    %cst_34 = arith.constant 0.000000e+00 : f32
    %29 = vector.broadcast %cst_34 : f32 to vector<64x32xf32>
    %30 = arith.maximumf %28, %29 : vector<64x32xf32>
    %cst_35 = arith.constant 0.000000e+00 : f32
    %31 = vector.broadcast %cst_35 : f32 to vector<8x1x32xf32>
    %c0_36 = arith.constant 0 : index
    %c0_37 = arith.constant 0 : index
    %c0_38 = arith.constant 0 : index
    %32 = vector.load %arg14[%c0_36, %c0_37, %c0_38] : memref<8x10x32xf32, #tpu.memory_space<vmem>>, vector<8x1x32xf32>
    tpu.vector_store %arg14[%c0_36, %c0_37, %c0_38], %31 {strides = array<i32>} : memref<8x10x32xf32, #tpu.memory_space<vmem>>, vector<8x1x32xf32>,
    %cst_39 = arith.constant 0.000000e+00 : f32
    %33 = vector.broadcast %cst_39 : f32 to vector<8x1x32xf32>
    %c0_40 = arith.constant 0 : index
    %c9_41 = arith.constant 9 : index
    %c0_42 = arith.constant 0 : index
    %34 = vector.load %arg14[%c0_40, %c9_41, %c0_42] : memref<8x10x32xf32, #tpu.memory_space<vmem>>, vector<8x1x32xf32>
    tpu.vector_store %arg14[%c0_40, %c9_41, %c0_42], %33 {strides = array<i32>} : memref<8x10x32xf32, #tpu.memory_space<vmem>>, vector<8x1x32xf32>,
    %35 = vector.shape_cast %30 : vector<64x32xf32> to vector<8x8x32xf32>
    %c0_43 = arith.constant 0 : index
    %c1_44 = arith.constant 1 : index
    %c0_45 = arith.constant 0 : index
    %36 = vector.load %arg14[%c0_43, %c1_44, %c0_45] : memref<8x10x32xf32, #tpu.memory_space<vmem>>, vector<8x8x32xf32>
    tpu.vector_store %arg14[%c0_43, %c1_44, %c0_45], %35 {strides = array<i32>} : memref<8x10x32xf32, #tpu.memory_space<vmem>>, vector<8x8x32xf32>,
    %c0_46 = arith.constant 0 : index
    %c0_47 = arith.constant 0 : index
    %c0_48 = arith.constant 0 : index
    %37 = vector.load %arg14[%c0_46, %c0_47, %c0_48] : memref<8x10x32xf32, #tpu.memory_space<vmem>>, vector<8x8x32xf32>
    %38 = vector.shape_cast %37 : vector<8x8x32xf32> to vector<64x32xf32>
    %c0_49 = arith.constant 0 : index
    %c1_50 = arith.constant 1 : index
    %c0_51 = arith.constant 0 : index
    %39 = vector.load %arg14[%c0_49, %c1_50, %c0_51] : memref<8x10x32xf32, #tpu.memory_space<vmem>>, vector<8x8x32xf32>
    %40 = vector.shape_cast %39 : vector<8x8x32xf32> to vector<64x32xf32>
    %c0_52 = arith.constant 0 : index
    %c2_53 = arith.constant 2 : index
    %c0_54 = arith.constant 0 : index
    %41 = vector.load %arg14[%c0_52, %c2_53, %c0_54] : memref<8x10x32xf32, #tpu.memory_space<vmem>>, vector<8x8x32xf32>
    %42 = vector.shape_cast %41 : vector<8x8x32xf32> to vector<64x32xf32>
    %c0_55 = arith.constant 0 : index
    %c0_56 = arith.constant 0 : index
    %c0_57 = arith.constant 0 : index
    %43 = vector.load %arg5[%c0_55, %c0_56, %c0_57] : memref<3x32x32xf32, #tpu.memory_space<vmem>>, vector<1x32x32xf32>
    %44 = vector.shape_cast %43 : vector<1x32x32xf32> to vector<32x32xf32>
    %cst_58 = arith.constant dense<0.000000e+00> : vector<64x32xf32>
    %45 = tpu.matmul %38, %44, %cst_58 {dimension_numbers = #tpu.dot_dimension_numbers<[1], [0], [0], [1], [0, 0, 1, 1], [], []>} : vector<64x32xf32>, vector<32x32xf32>, vector<64x32xf32> -> vector<64x32xf32>
    %c1_59 = arith.constant 1 : index
    %c0_60 = arith.constant 0 : index
    %c0_61 = arith.constant 0 : index
    %46 = vector.load %arg5[%c1_59, %c0_60, %c0_61] : memref<3x32x32xf32, #tpu.memory_space<vmem>>, vector<1x32x32xf32>
    %47 = vector.shape_cast %46 : vector<1x32x32xf32> to vector<32x32xf32>
    %cst_62 = arith.constant dense<0.000000e+00> : vector<64x32xf32>
    %48 = tpu.matmul %40, %47, %cst_62 {dimension_numbers = #tpu.dot_dimension_numbers<[1], [0], [0], [1], [0, 0, 1, 1], [], []>} : vector<64x32xf32>, vector<32x32xf32>, vector<64x32xf32> -> vector<64x32xf32>
    %49 = arith.addf %45, %48 : vector<64x32xf32>
    %c2_63 = arith.constant 2 : index
    %c0_64 = arith.constant 0 : index
    %c0_65 = arith.constant 0 : index
    %50 = vector.load %arg5[%c2_63, %c0_64, %c0_65] : memref<3x32x32xf32, #tpu.memory_space<vmem>>, vector<1x32x32xf32>
    %51 = vector.shape_cast %50 : vector<1x32x32xf32> to vector<32x32xf32>
    %cst_66 = arith.constant dense<0.000000e+00> : vector<64x32xf32>
    %52 = tpu.matmul %42, %51, %cst_66 {dimension_numbers = #tpu.dot_dimension_numbers<[1], [0], [0], [1], [0, 0, 1, 1], [], []>} : vector<64x32xf32>, vector<32x32xf32>, vector<64x32xf32> -> vector<64x32xf32>
    %53 = arith.addf %49, %52 : vector<64x32xf32>
    %c0_67 = arith.constant 0 : index
    %c0_68 = arith.constant 0 : index
    %54 = vector.load %arg6[%c0_67, %c0_68] : memref<1x32xf32, #tpu.memory_space<vmem>>, vector<1x32xf32>
    %55 = vector.broadcast %54 : vector<1x32xf32> to vector<64x32xf32>
    %56 = arith.mulf %53, %55 : vector<64x32xf32>
    %c0_69 = arith.constant 0 : index
    %c0_70 = arith.constant 0 : index
    %57 = vector.load %arg7[%c0_69, %c0_70] : memref<1x32xf32, #tpu.memory_space<vmem>>, vector<1x32xf32>
    %58 = vector.broadcast %57 : vector<1x32xf32> to vector<64x32xf32>
    %59 = arith.addf %56, %58 : vector<64x32xf32>
    %cst_71 = arith.constant 0.000000e+00 : f32
    %60 = vector.broadcast %cst_71 : f32 to vector<64x32xf32>
    %61 = arith.maximumf %59, %60 : vector<64x32xf32>
    %62 = vector.shape_cast %61 : vector<64x32xf32> to vector<8x8x32xf32>
    %63 = vector.extract_strided_slice %62 {offsets = [0, 0, 0], sizes = [8, 1, 32], strides = [1, 1, 1]} : vector<8x8x32xf32> to vector<8x1x32xf32>
    %64 = vector.shape_cast %63 : vector<8x1x32xf32> to vector<8x32xf32>
    %c0_72 = arith.constant 0 : index
    %c0_73 = arith.constant 0 : index
    %c0_74 = arith.constant 0 : index
    %65 = vector.load %arg8[%c0_72, %c0_73, %c0_74] : memref<8x32x64xf32, #tpu.memory_space<vmem>>, vector<1x32x64xf32>
    %66 = vector.shape_cast %65 : vector<1x32x64xf32> to vector<32x64xf32>
    %cst_75 = arith.constant dense<0.000000e+00> : vector<8x64xf32>
    %67 = tpu.matmul %64, %66, %cst_75 {dimension_numbers = #tpu.dot_dimension_numbers<[1], [0], [0], [1], [0, 0, 1, 1], [], []>} : vector<8x32xf32>, vector<32x64xf32>, vector<8x64xf32> -> vector<8x64xf32>
    %68 = vector.extract_strided_slice %62 {offsets = [0, 1, 0], sizes = [8, 1, 32], strides = [1, 1, 1]} : vector<8x8x32xf32> to vector<8x1x32xf32>
    %69 = vector.shape_cast %68 : vector<8x1x32xf32> to vector<8x32xf32>
    %c1_76 = arith.constant 1 : index
    %c0_77 = arith.constant 0 : index
    %c0_78 = arith.constant 0 : index
    %70 = vector.load %arg8[%c1_76, %c0_77, %c0_78] : memref<8x32x64xf32, #tpu.memory_space<vmem>>, vector<1x32x64xf32>
    %71 = vector.shape_cast %70 : vector<1x32x64xf32> to vector<32x64xf32>
    %cst_79 = arith.constant dense<0.000000e+00> : vector<8x64xf32>
    %72 = tpu.matmul %69, %71, %cst_79 {dimension_numbers = #tpu.dot_dimension_numbers<[1], [0], [0], [1], [0, 0, 1, 1], [], []>} : vector<8x32xf32>, vector<32x64xf32>, vector<8x64xf32> -> vector<8x64xf32>
    %73 = arith.addf %67, %72 : vector<8x64xf32>
    %74 = vector.extract_strided_slice %62 {offsets = [0, 2, 0], sizes = [8, 1, 32], strides = [1, 1, 1]} : vector<8x8x32xf32> to vector<8x1x32xf32>
    %75 = vector.shape_cast %74 : vector<8x1x32xf32> to vector<8x32xf32>
    %c2_80 = arith.constant 2 : index
    %c0_81 = arith.constant 0 : index
    %c0_82 = arith.constant 0 : index
    %76 = vector.load %arg8[%c2_80, %c0_81, %c0_82] : memref<8x32x64xf32, #tpu.memory_space<vmem>>, vector<1x32x64xf32>
    %77 = vector.shape_cast %76 : vector<1x32x64xf32> to vector<32x64xf32>
    %cst_83 = arith.constant dense<0.000000e+00> : vector<8x64xf32>
    %78 = tpu.matmul %75, %77, %cst_83 {dimension_numbers = #tpu.dot_dimension_numbers<[1], [0], [0], [1], [0, 0, 1, 1], [], []>} : vector<8x32xf32>, vector<32x64xf32>, vector<8x64xf32> -> vector<8x64xf32>
    %79 = arith.addf %73, %78 : vector<8x64xf32>
    %80 = vector.extract_strided_slice %62 {offsets = [0, 3, 0], sizes = [8, 1, 32], strides = [1, 1, 1]} : vector<8x8x32xf32> to vector<8x1x32xf32>
    %81 = vector.shape_cast %80 : vector<8x1x32xf32> to vector<8x32xf32>
    %c3 = arith.constant 3 : index
    %c0_84 = arith.constant 0 : index
    %c0_85 = arith.constant 0 : index
    %82 = vector.load %arg8[%c3, %c0_84, %c0_85] : memref<8x32x64xf32, #tpu.memory_space<vmem>>, vector<1x32x64xf32>
    %83 = vector.shape_cast %82 : vector<1x32x64xf32> to vector<32x64xf32>
    %cst_86 = arith.constant dense<0.000000e+00> : vector<8x64xf32>
    %84 = tpu.matmul %81, %83, %cst_86 {dimension_numbers = #tpu.dot_dimension_numbers<[1], [0], [0], [1], [0, 0, 1, 1], [], []>} : vector<8x32xf32>, vector<32x64xf32>, vector<8x64xf32> -> vector<8x64xf32>
    %85 = arith.addf %79, %84 : vector<8x64xf32>
    %86 = vector.extract_strided_slice %62 {offsets = [0, 4, 0], sizes = [8, 1, 32], strides = [1, 1, 1]} : vector<8x8x32xf32> to vector<8x1x32xf32>
    %87 = vector.shape_cast %86 : vector<8x1x32xf32> to vector<8x32xf32>
    %c4 = arith.constant 4 : index
    %c0_87 = arith.constant 0 : index
    %c0_88 = arith.constant 0 : index
    %88 = vector.load %arg8[%c4, %c0_87, %c0_88] : memref<8x32x64xf32, #tpu.memory_space<vmem>>, vector<1x32x64xf32>
    %89 = vector.shape_cast %88 : vector<1x32x64xf32> to vector<32x64xf32>
    %cst_89 = arith.constant dense<0.000000e+00> : vector<8x64xf32>
    %90 = tpu.matmul %87, %89, %cst_89 {dimension_numbers = #tpu.dot_dimension_numbers<[1], [0], [0], [1], [0, 0, 1, 1], [], []>} : vector<8x32xf32>, vector<32x64xf32>, vector<8x64xf32> -> vector<8x64xf32>
    %91 = arith.addf %85, %90 : vector<8x64xf32>
    %92 = vector.extract_strided_slice %62 {offsets = [0, 5, 0], sizes = [8, 1, 32], strides = [1, 1, 1]} : vector<8x8x32xf32> to vector<8x1x32xf32>
    %93 = vector.shape_cast %92 : vector<8x1x32xf32> to vector<8x32xf32>
    %c5 = arith.constant 5 : index
    %c0_90 = arith.constant 0 : index
    %c0_91 = arith.constant 0 : index
    %94 = vector.load %arg8[%c5, %c0_90, %c0_91] : memref<8x32x64xf32, #tpu.memory_space<vmem>>, vector<1x32x64xf32>
    %95 = vector.shape_cast %94 : vector<1x32x64xf32> to vector<32x64xf32>
    %cst_92 = arith.constant dense<0.000000e+00> : vector<8x64xf32>
    %96 = tpu.matmul %93, %95, %cst_92 {dimension_numbers = #tpu.dot_dimension_numbers<[1], [0], [0], [1], [0, 0, 1, 1], [], []>} : vector<8x32xf32>, vector<32x64xf32>, vector<8x64xf32> -> vector<8x64xf32>
    %97 = arith.addf %91, %96 : vector<8x64xf32>
    %98 = vector.extract_strided_slice %62 {offsets = [0, 6, 0], sizes = [8, 1, 32], strides = [1, 1, 1]} : vector<8x8x32xf32> to vector<8x1x32xf32>
    %99 = vector.shape_cast %98 : vector<8x1x32xf32> to vector<8x32xf32>
    %c6 = arith.constant 6 : index
    %c0_93 = arith.constant 0 : index
    %c0_94 = arith.constant 0 : index
    %100 = vector.load %arg8[%c6, %c0_93, %c0_94] : memref<8x32x64xf32, #tpu.memory_space<vmem>>, vector<1x32x64xf32>
    %101 = vector.shape_cast %100 : vector<1x32x64xf32> to vector<32x64xf32>
    %cst_95 = arith.constant dense<0.000000e+00> : vector<8x64xf32>
    %102 = tpu.matmul %99, %101, %cst_95 {dimension_numbers = #tpu.dot_dimension_numbers<[1], [0], [0], [1], [0, 0, 1, 1], [], []>} : vector<8x32xf32>, vector<32x64xf32>, vector<8x64xf32> -> vector<8x64xf32>
    %103 = arith.addf %97, %102 : vector<8x64xf32>
    %104 = vector.extract_strided_slice %62 {offsets = [0, 7, 0], sizes = [8, 1, 32], strides = [1, 1, 1]} : vector<8x8x32xf32> to vector<8x1x32xf32>
    %105 = vector.shape_cast %104 : vector<8x1x32xf32> to vector<8x32xf32>
    %c7 = arith.constant 7 : index
    %c0_96 = arith.constant 0 : index
    %c0_97 = arith.constant 0 : index
    %106 = vector.load %arg8[%c7, %c0_96, %c0_97] : memref<8x32x64xf32, #tpu.memory_space<vmem>>, vector<1x32x64xf32>
    %107 = vector.shape_cast %106 : vector<1x32x64xf32> to vector<32x64xf32>
    %cst_98 = arith.constant dense<0.000000e+00> : vector<8x64xf32>
    %108 = tpu.matmul %105, %107, %cst_98 {dimension_numbers = #tpu.dot_dimension_numbers<[1], [0], [0], [1], [0, 0, 1, 1], [], []>} : vector<8x32xf32>, vector<32x64xf32>, vector<8x64xf32> -> vector<8x64xf32>
    %109 = arith.addf %103, %108 : vector<8x64xf32>
    %c0_99 = arith.constant 0 : index
    %c0_100 = arith.constant 0 : index
    %110 = vector.load %arg9[%c0_99, %c0_100] : memref<1x64xf32, #tpu.memory_space<vmem>>, vector<1x64xf32>
    %111 = vector.broadcast %110 : vector<1x64xf32> to vector<8x64xf32>
    %112 = arith.addf %109, %111 : vector<8x64xf32>
    %cst_101 = arith.constant 0.000000e+00 : f32
    %113 = vector.broadcast %cst_101 : f32 to vector<8x64xf32>
    %114 = arith.maximumf %112, %113 : vector<8x64xf32>
    %c0_102 = arith.constant 0 : index
    %c0_103 = arith.constant 0 : index
    %115 = vector.load %arg10[%c0_102, %c0_103] : memref<64x128xf32, #tpu.memory_space<vmem>>, vector<64x128xf32>
    %cst_104 = arith.constant dense<0.000000e+00> : vector<8x128xf32>
    %116 = tpu.matmul %114, %115, %cst_104 {dimension_numbers = #tpu.dot_dimension_numbers<[1], [0], [0], [1], [0, 0, 1, 1], [], []>} : vector<8x64xf32>, vector<64x128xf32>, vector<8x128xf32> -> vector<8x128xf32>
    %c0_105 = arith.constant 0 : index
    %c0_106 = arith.constant 0 : index
    %117 = vector.load %arg11[%c0_105, %c0_106] : memref<1x128xf32, #tpu.memory_space<vmem>>, vector<1x128xf32>
    %118 = vector.broadcast %117 : vector<1x128xf32> to vector<8x128xf32>
    %119 = arith.addf %116, %118 : vector<8x128xf32>
    %c0_107 = arith.constant 0 : index
    %c0_108 = arith.constant 0 : index
    %120 = vector.load %arg12[%c0_107, %c0_108] : memref<8x128xf32, #tpu.memory_space<vmem>>, vector<8x128xf32>
    tpu.vector_store %arg12[%c0_107, %c0_108], %119 {strides = array<i32>} : memref<8x128xf32, #tpu.memory_space<vmem>>, vector<8x128xf32>,
    return
  }
  func.func @transform_0(%arg0: i32) -> (i32, i32, i32) {
    %c0_i32 = arith.constant 0 : i32
    %c0_i32_0 = arith.constant 0 : i32
    %c0_i32_1 = arith.constant 0 : i32
    return %arg0, %c0_i32, %c0_i32_0 : i32, i32, i32
  }
  func.func @transform_1(%arg0: i32) -> (i32, i32, i32) {
    %c0_i32 = arith.constant 0 : i32
    %c0_i32_0 = arith.constant 0 : i32
    %c0_i32_1 = arith.constant 0 : i32
    %c0_i32_2 = arith.constant 0 : i32
    return %c0_i32, %c0_i32_0, %c0_i32_1 : i32, i32, i32
  }
  func.func @transform_2(%arg0: i32) -> (i32, i32) {
    %c0_i32 = arith.constant 0 : i32
    %c0_i32_0 = arith.constant 0 : i32
    %c0_i32_1 = arith.constant 0 : i32
    return %c0_i32, %c0_i32_0 : i32, i32
  }
  func.func @transform_3(%arg0: i32) -> (i32, i32) {
    %c0_i32 = arith.constant 0 : i32
    %c0_i32_0 = arith.constant 0 : i32
    %c0_i32_1 = arith.constant 0 : i32
    return %c0_i32, %c0_i32_0 : i32, i32
  }
  func.func @transform_4(%arg0: i32) -> (i32, i32, i32) {
    %c0_i32 = arith.constant 0 : i32
    %c0_i32_0 = arith.constant 0 : i32
    %c0_i32_1 = arith.constant 0 : i32
    %c0_i32_2 = arith.constant 0 : i32
    return %c0_i32, %c0_i32_0, %c0_i32_1 : i32, i32, i32
  }
  func.func @transform_5(%arg0: i32) -> (i32, i32) {
    %c0_i32 = arith.constant 0 : i32
    %c0_i32_0 = arith.constant 0 : i32
    %c0_i32_1 = arith.constant 0 : i32
    return %c0_i32, %c0_i32_0 : i32, i32
  }
  func.func @transform_6(%arg0: i32) -> (i32, i32) {
    %c0_i32 = arith.constant 0 : i32
    %c0_i32_0 = arith.constant 0 : i32
    %c0_i32_1 = arith.constant 0 : i32
    return %c0_i32, %c0_i32_0 : i32, i32
  }
  func.func @transform_7(%arg0: i32) -> (i32, i32, i32) {
    %c0_i32 = arith.constant 0 : i32
    %c0_i32_0 = arith.constant 0 : i32
    %c0_i32_1 = arith.constant 0 : i32
    %c0_i32_2 = arith.constant 0 : i32
    return %c0_i32, %c0_i32_0, %c0_i32_1 : i32, i32, i32
  }
  func.func @transform_8(%arg0: i32) -> (i32, i32) {
    %c0_i32 = arith.constant 0 : i32
    %c0_i32_0 = arith.constant 0 : i32
    %c0_i32_1 = arith.constant 0 : i32
    return %c0_i32, %c0_i32_0 : i32, i32
  }
  func.func @transform_9(%arg0: i32) -> (i32, i32) {
    %c0_i32 = arith.constant 0 : i32
    %c0_i32_0 = arith.constant 0 : i32
    %c0_i32_1 = arith.constant 0 : i32
    return %c0_i32, %c0_i32_0 : i32, i32
  }
  func.func @transform_10(%arg0: i32) -> (i32, i32) {
    %c0_i32 = arith.constant 0 : i32
    %c0_i32_0 = arith.constant 0 : i32
    %c0_i32_1 = arith.constant 0 : i32
    return %c0_i32, %c0_i32_0 : i32, i32
  }
  func.func @transform_11(%arg0: i32) -> (i32, i32) {
    %c0_i32 = arith.constant 0 : i32
    %c0_i32_0 = arith.constant 0 : i32
    return %arg0, %c0_i32 : i32, i32
  }
}

</mosaic_0001>

<llo_original>
// kernel: tpu_custom_call.1
$region0: #{tpu_custom_call.1}
  #allocation0 [shape = 'u32[]', space=smem, size = 0x4, offset = 0x4, fixed_abs, tag = 'smem constant byte address 0x4 - core index']
  #allocation1 [shape = 'u32[144,128]{1,0:T(1,128)}', space=vmem, size = 0x12000, scoped, tag = 'internal scratch']
  #allocation2 [shape = 'f32[8,10,34]{2,1,0:T(8,128)}', space=vmem, size = 0x10000, scoped, tag = 'scratch operand']
  #allocation3 [shape = 'f32[8,10,32]{2,1,0:T(8,128)}', space=vmem, size = 0x10000, scoped, tag = 'scratch operand']
  %s0 = inlined_call_operand.vmem [shape: f32[16,8,34], index: 0, kind: input, shape index: {}]
  %s1 = inlined_call_operand.vmem [shape: f32[3,34,32], index: 1, kind: input, shape index: {}]
  %s2 = inlined_call_operand.vmem [shape: f32[1,32], index: 2, kind: input, shape index: {}]
  %s3 = inlined_call_operand.vmem [shape: f32[1,32], index: 3, kind: input, shape index: {}]
  %s4 = inlined_call_operand.vmem [shape: f32[3,32,32], index: 4, kind: input, shape index: {}]
  %s5 = inlined_call_operand.vmem [shape: f32[1,32], index: 5, kind: input, shape index: {}]
  %s6 = inlined_call_operand.vmem [shape: f32[1,32], index: 6, kind: input, shape index: {}]
  %s7 = inlined_call_operand.hbm [shape: f32[8,32,64], index: 7, kind: input, shape index: {}]
  %s8 = inlined_call_operand.vmem [shape: f32[1,64], index: 8, kind: input, shape index: {}]
  %s9 = inlined_call_operand.hbm [shape: f32[64,128], index: 9, kind: input, shape index: {}]
  %s10 = inlined_call_operand.vmem [shape: f32[1,128], index: 10, kind: input, shape index: {}]
  %s11 = inlined_call_operand.hbm [shape: f32[16,128], index: 11, kind: output, shape index: {}]
  %s12 = sld [smem:[#allocation0]]
  $region85: #{tpu_custom_call.1} parent=0
    _
  %s14 = ssub.s32 1, %s12
  %s15 = scalar_select 0, %s14, %s12
  $region1: #{tpu_custom_call.1} parent=0
    #allocation4 [shape = 'u8[131072]{0}', space=vmem, size = 0x20000, scoped, tag = 'input window, operand 7, single buffered']
    #allocation5 [shape = 's32[2]{0}', space=sflag, size = 0x8, scoped, tag = 'scoped memory for tpu_custom_call.1']
    #allocation6 [shape = 's32[2]{0}', space=sflag, size = 0x8, scoped, tag = 'scoped memory for tpu_custom_call.1']
    #allocation7 [shape = 'u8[32768]{0}', space=vmem, size = 0x8000, scoped, tag = 'input window, operand 9, single buffered']
    #allocation8 [shape = 's32[1]{0}', space=sflag, size = 0x4, scoped, tag = 'scoped memory for tpu_custom_call.1']
    #allocation9 [shape = 'u8[8192]{0}', space=vmem, size = 0x2000, scoped, tag = 'output window, operand 0']
    %16 = vsyncpa [#allocation5], 0
    %17 = vsyncpa [#allocation8], 0
    %18 = vsyncpa [#allocation6], 0
    %s19 = scalar_lea.sflag [#allocation6], 1
    %20 = vsyncpa %s19, 0
    loop: start=0, step=1, limit=4
    $region2: #{tpu_custom_call.1} parent=1 // loop_pre_header
      _
    $region3: #{tpu_custom_call.1} parent=1 // loop_header
      %s22 = sphi 0, %s26
      %p23 = scmp.ge.s32.totalorder %s22, 4
      %s32 = sphi 0, %s34
      %s35 = sphi 0, %s32
      %s36 = sphi 0, %s35
      %s52 = sphi 0, %s36
      %s56 = sphi 0, %s56
      %s58 = sphi 0, %s56
      %s59 = sphi 0, %s58
      %s73 = sphi 0, %s59
      %s77 = sphi 0, %s77
      %s79 = sphi 0, %s77
      %s80 = sphi 0, %s79
      %s94 = sphi 0, %s80
      %s98 = sphi 0, %s98
      %s100 = sphi 0, %s98
      %s101 = sphi 0, %s100
      %s115 = sphi 0, %s101
      %s119 = sphi 0, %s119
      %s121 = sphi 0, %s119
      %s122 = sphi 0, %s121
      %s136 = sphi 0, %s122
      %s140 = sphi 0, %s140
      %s142 = sphi 0, %s140
      %s143 = sphi 0, %s142
      %s157 = sphi 0, %s143
      %s161 = sphi 0, %s161
      %s163 = sphi 0, %s161
      %s164 = sphi 0, %s163
      %s178 = sphi 0, %s164
      %s182 = sphi 0, %s182
      %s184 = sphi 0, %s182
      %s185 = sphi 0, %s184
      %s199 = sphi 0, %s185
      %s203 = sphi 0, %s203
      %s205 = sphi 0, %s203
      %s206 = sphi 0, %s205
      %s220 = sphi 0, %s206
      %s224 = sphi 0, %s224
      %s226 = sphi 0, %s224
      %s227 = sphi 0, %s226
      %s241 = sphi 0, %s227
      %s245 = sphi 0, %s245
      %s247 = sphi 0, %s245
      %s248 = sphi 0, %s247
      %s262 = sphi 0, %s248
      %s268 = sphi 0, %s270
      %s271 = sphi 0, %s268
      %s272 = sphi 0, %s271
      %s288 = sphi 0, %s272
    $region4: #{tpu_custom_call.1} parent=1 // loop_header_branch
      %25 = sbr.rel (%p23) target = $region8
    $region5: #{tpu_custom_call.1} parent=1 // loop_body
      %s27 = ssub.s32 %s22, 1
      %s28 = ssub.s32 %s22, 2
      %s29 = sadd.s32 %s22, 1
      %s30 = ssub.s32 %s22, %s29
      %p31 = scmp.eq.s32.totalorder %s30, 0
      %s33 = sadd.s32 %s32, 1
      %s34 = scalar_select %p31, %s32, %s33
      %p37 = pneg %p31
      %p38 = scmp.eq.s32.totalorder %s22, 1
      %p39 = por %p37, %p38
      %p40 = scmp.ne.s32.totalorder %s32, %s35
      %p41 = scmp.eq.s32.totalorder %s22, 0
      %p42 = por %p40, %p41
      %p43 = scmp.ne.s32.totalorder %s32, %s35
      %p44 = scmp.eq.s32.totalorder %s27, 1
      %p45 = por %p43, %p44
      %p46 = scmp.ne.s32.totalorder %s35, %s36
      %p47 = scmp.eq.s32.totalorder %s27, 0
      %p48 = por %p46, %p47
      %p49 = scmp.ne.s32.totalorder %s35, %s36
      %p50 = scmp.eq.s32.totalorder %s28, 1
      %p51 = por %p49, %p50
      %p53 = scmp.ne.s32.totalorder %s36, %s52
      %p54 = scmp.eq.s32.totalorder %s28, 0
      %p55 = por %p53, %p54
      %s57 = sadd.s32 %s56, 1
      %p60 = scmp.eq.s32.totalorder %s22, 1
      %p61 = scmp.ne.s32.totalorder %s56, %s58
      %p62 = scmp.eq.s32.totalorder %s22, 0
      %p63 = por %p61, %p62
      %p64 = scmp.ne.s32.totalorder %s56, %s58
      %p65 = scmp.eq.s32.totalorder %s27, 1
      %p66 = por %p64, %p65
      %p67 = scmp.ne.s32.totalorder %s58, %s59
      %p68 = scmp.eq.s32.totalorder %s27, 0
      %p69 = por %p67, %p68
      %p70 = scmp.ne.s32.totalorder %s58, %s59
      %p71 = scmp.eq.s32.totalorder %s28, 1
      %p72 = por %p70, %p71
      %p74 = scmp.ne.s32.totalorder %s59, %s73
      %p75 = scmp.eq.s32.totalorder %s28, 0
      %p76 = por %p74, %p75
      %s78 = sadd.s32 %s77, 1
      %p81 = scmp.eq.s32.totalorder %s22, 1
      %p82 = scmp.ne.s32.totalorder %s77, %s79
      %p83 = scmp.eq.s32.totalorder %s22, 0
      %p84 = por %p82, %p83
      %p85 = scmp.ne.s32.totalorder %s77, %s79
      %p86 = scmp.eq.s32.totalorder %s27, 1
      %p87 = por %p85, %p86
      %p88 = scmp.ne.s32.totalorder %s79, %s80
      %p89 = scmp.eq.s32.totalorder %s27, 0
      %p90 = por %p88, %p89
      %p91 = scmp.ne.s32.totalorder %s79, %s80
      %p92 = scmp.eq.s32.totalorder %s28, 1
      %p93 = por %p91, %p92
      %p95 = scmp.ne.s32.totalorder %s80, %s94
      %p96 = scmp.eq.s32.totalorder %s28, 0
      %p97 = por %p95, %p96
      %s99 = sadd.s32 %s98, 1
      %p102 = scmp.eq.s32.totalorder %s22, 1
      %p103 = scmp.ne.s32.totalorder %s98, %s100
      %p104 = scmp.eq.s32.totalorder %s22, 0
      %p105 = por %p103, %p104
      %p106 = scmp.ne.s32.totalorder %s98, %s100
      %p107 = scmp.eq.s32.totalorder %s27, 1
      %p108 = por %p106, %p107
      %p109 = scmp.ne.s32.totalorder %s100, %s101
      %p110 = scmp.eq.s32.totalorder %s27, 0
      %p111 = por %p109, %p110
      %p112 = scmp.ne.s32.totalorder %s100, %s101
      %p113 = scmp.eq.s32.totalorder %s28, 1
      %p114 = por %p112, %p113
      %p116 = scmp.ne.s32.totalorder %s101, %s115
      %p117 = scmp.eq.s32.totalorder %s28, 0
      %p118 = por %p116, %p117
      %s120 = sadd.s32 %s119, 1
      %p123 = scmp.eq.s32.totalorder %s22, 1
      %p124 = scmp.ne.s32.totalorder %s119, %s121
      %p125 = scmp.eq.s32.totalorder %s22, 0
      %p126 = por %p124, %p125
      %p127 = scmp.ne.s32.totalorder %s119, %s121
      %p128 = scmp.eq.s32.totalorder %s27, 1
      %p129 = por %p127, %p128
      %p130 = scmp.ne.s32.totalorder %s121, %s122
      %p131 = scmp.eq.s32.totalorder %s27, 0
      %p132 = por %p130, %p131
      %p133 = scmp.ne.s32.totalorder %s121, %s122
      %p134 = scmp.eq.s32.totalorder %s28, 1
      %p135 = por %p133, %p134
      %p137 = scmp.ne.s32.totalorder %s122, %s136
      %p138 = scmp.eq.s32.totalorder %s28, 0
      %p139 = por %p137, %p138
      %s141 = sadd.s32 %s140, 1
      %p144 = scmp.eq.s32.totalorder %s22, 1
      %p145 = scmp.ne.s32.totalorder %s140, %s142
      %p146 = scmp.eq.s32.totalorder %s22, 0
      %p147 = por %p145, %p146
      %p148 = scmp.ne.s32.totalorder %s140, %s142
      %p149 = scmp.eq.s32.totalorder %s27, 1
      %p150 = por %p148, %p149
      %p151 = scmp.ne.s32.totalorder %s142, %s143
      %p152 = scmp.eq.s32.totalorder %s27, 0
      %p153 = por %p151, %p152
      %p154 = scmp.ne.s32.totalorder %s142, %s143
      %p155 = scmp.eq.s32.totalorder %s28, 1
      %p156 = por %p154, %p155
      %p158 = scmp.ne.s32.totalorder %s143, %s157
      %p159 = scmp.eq.s32.totalorder %s28, 0
      %p160 = por %p158, %p159
      %s162 = sadd.s32 %s161, 1
      %p165 = scmp.eq.s32.totalorder %s22, 1
      %p166 = scmp.ne.s32.totalorder %s161, %s163
      %p167 = scmp.eq.s32.totalorder %s22, 0
      %p168 = por %p166, %p167
      %p169 = scmp.ne.s32.totalorder %s161, %s163
      %p170 = scmp.eq.s32.totalorder %s27, 1
      %p171 = por %p169, %p170
      %p172 = scmp.ne.s32.totalorder %s163, %s164
      %p173 = scmp.eq.s32.totalorder %s27, 0
      %p174 = por %p172, %p173
      %p175 = scmp.ne.s32.totalorder %s163, %s164
      %p176 = scmp.eq.s32.totalorder %s28, 1
      %p177 = por %p175, %p176
      %p179 = scmp.ne.s32.totalorder %s164, %s178
      %p180 = scmp.eq.s32.totalorder %s28, 0
      %p181 = por %p179, %p180
      %s183 = sadd.s32 %s182, 1
      %p186 = scmp.eq.s32.totalorder %s22, 1
      %p187 = scmp.ne.s32.totalorder %s182, %s184
      %p188 = scmp.eq.s32.totalorder %s22, 0
      %p189 = por %p187, %p188
      %p190 = scmp.ne.s32.totalorder %s182, %s184
      %p191 = scmp.eq.s32.totalorder %s27, 1
      %p192 = por %p190, %p191
      %p193 = scmp.ne.s32.totalorder %s184, %s185
      %p194 = scmp.eq.s32.totalorder %s27, 0
      %p195 = por %p193, %p194
      %p196 = scmp.ne.s32.totalorder %s184, %s185
      %p197 = scmp.eq.s32.totalorder %s28, 1
      %p198 = por %p196, %p197
      %p200 = scmp.ne.s32.totalorder %s185, %s199
      %p201 = scmp.eq.s32.totalorder %s28, 0
      %p202 = por %p200, %p201
      %s204 = sadd.s32 %s203, 1
      %p207 = scmp.eq.s32.totalorder %s22, 1
      %p208 = scmp.ne.s32.totalorder %s203, %s205
      %p209 = scmp.eq.s32.totalorder %s22, 0
      %p210 = por %p208, %p209
      %p211 = scmp.ne.s32.totalorder %s203, %s205
      %p212 = scmp.eq.s32.totalorder %s27, 1
      %p213 = por %p211, %p212
      %p214 = scmp.ne.s32.totalorder %s205, %s206
      %p215 = scmp.eq.s32.totalorder %s27, 0
      %p216 = por %p214, %p215
      %p217 = scmp.ne.s32.totalorder %s205, %s206
      %p218 = scmp.eq.s32.totalorder %s28, 1
      %p219 = por %p217, %p218
      %p221 = scmp.ne.s32.totalorder %s206, %s220
      %p222 = scmp.eq.s32.totalorder %s28, 0
      %p223 = por %p221, %p222
      %s225 = sadd.s32 %s224, 1
      %p228 = scmp.eq.s32.totalorder %s22, 1
      %p229 = scmp.ne.s32.totalorder %s224, %s226
      %p230 = scmp.eq.s32.totalorder %s22, 0
      %p231 = por %p229, %p230
      %p232 = scmp.ne.s32.totalorder %s224, %s226
      %p233 = scmp.eq.s32.totalorder %s27, 1
      %p234 = por %p232, %p233
      %p235 = scmp.ne.s32.totalorder %s226, %s227
      %p236 = scmp.eq.s32.totalorder %s27, 0
      %p237 = por %p235, %p236
      %p238 = scmp.ne.s32.totalorder %s226, %s227
      %p239 = scmp.eq.s32.totalorder %s28, 1
      %p240 = por %p238, %p239
      %p242 = scmp.ne.s32.totalorder %s227, %s241
      %p243 = scmp.eq.s32.totalorder %s28, 0
      %p244 = por %p242, %p243
      %s246 = sadd.s32 %s245, 1
      %p249 = scmp.eq.s32.totalorder %s22, 1
      %p250 = scmp.ne.s32.totalorder %s245, %s247
      %p251 = scmp.eq.s32.totalorder %s22, 0
      %p252 = por %p250, %p251
      %p253 = scmp.ne.s32.totalorder %s245, %s247
      %p254 = scmp.eq.s32.totalorder %s27, 1
      %p255 = por %p253, %p254
      %p256 = scmp.ne.s32.totalorder %s247, %s248
      %p257 = scmp.eq.s32.totalorder %s27, 0
      %p258 = por %p256, %p257
      %p259 = scmp.ne.s32.totalorder %s247, %s248
      %p260 = scmp.eq.s32.totalorder %s28, 1
      %p261 = por %p259, %p260
      %p263 = scmp.ne.s32.totalorder %s248, %s262
      %p264 = scmp.eq.s32.totalorder %s28, 0
      %p265 = por %p263, %p264
      %s266 = ssub.s32 %s22, %s29
      %p267 = scmp.eq.s32.totalorder %s266, 0
      %s269 = sadd.s32 %s268, 1
      %s270 = scalar_select %p267, %s268, %s269
      %p273 = pneg %p267
      %p274 = scmp.eq.s32.totalorder %s22, 1
      %p275 = por %p273, %p274
      %p276 = scmp.ne.s32.totalorder %s268, %s271
      %p277 = scmp.eq.s32.totalorder %s22, 0
      %p278 = por %p276, %p277
      %p279 = scmp.ne.s32.totalorder %s268, %s271
      %p280 = scmp.eq.s32.totalorder %s27, 1
      %p281 = por %p279, %p280
      %p282 = scmp.ne.s32.totalorder %s271, %s272
      %p283 = scmp.eq.s32.totalorder %s27, 0
      %p284 = por %p282, %p283
      %p285 = scmp.ne.s32.totalorder %s271, %s272
      %p286 = scmp.eq.s32.totalorder %s28, 1
      %p287 = por %p285, %p286
      %p289 = scmp.ne.s32.totalorder %s272, %s288
      %p290 = scmp.eq.s32.totalorder %s28, 0
      %p291 = por %p289, %p290
      %p292 = scmp.le.s32.totalorder 1, %s22
      %p293 = scmp.lt.s32.totalorder %s22, 3
      %p294 = pnand %p292, %p293
      %p295 = pneg %p294
      // Predicated region
      $region9: #{tpu_custom_call.1} parent=5 // pred_check
        _
      $region10: #{tpu_custom_call.1} parent=5 // pred_check_branch
        %297 = sbr.rel (%p294) target = $region12
      $region11: #{tpu_custom_call.1} parent=5 // pred_region
        %s298 = ssub.s32 %s22, 1
        // Predicated region
        $region13: #{tpu_custom_call.1} parent=11 // pred_check
          %p299 = pneg %p69
        $region14: #{tpu_custom_call.1} parent=11 // pred_check_branch
          %301 = sbr.rel (%p299) target = $region16
        $region15: #{tpu_custom_call.1} parent=11 // pred_region
          _
        $region16: #{tpu_custom_call.1} parent=11 // pred_fallthru
          _
        // Predicated region
        $region17: #{tpu_custom_call.1} parent=11 // pred_check
          %p302 = pneg %p90
        $region18: #{tpu_custom_call.1} parent=11 // pred_check_branch
          %304 = sbr.rel (%p302) target = $region20
        $region19: #{tpu_custom_call.1} parent=11 // pred_region
          _
        $region20: #{tpu_custom_call.1} parent=11 // pred_fallthru
          _
        // Predicated region
        $region21: #{tpu_custom_call.1} parent=11 // pred_check
          %p305 = pneg %p111
        $region22: #{tpu_custom_call.1} parent=11 // pred_check_branch
          %307 = sbr.rel (%p305) target = $region24
        $region23: #{tpu_custom_call.1} parent=11 // pred_region
          _
        $region24: #{tpu_custom_call.1} parent=11 // pred_fallthru
          _
        // Predicated region
        $region25: #{tpu_custom_call.1} parent=11 // pred_check
          %p308 = pneg %p132
        $region26: #{tpu_custom_call.1} parent=11 // pred_check_branch
          %310 = sbr.rel (%p308) target = $region28
        $region27: #{tpu_custom_call.1} parent=11 // pred_region
          _
        $region28: #{tpu_custom_call.1} parent=11 // pred_fallthru
          _
        // Predicated region
        $region29: #{tpu_custom_call.1} parent=11 // pred_check
          %p311 = pneg %p153
        $region30: #{tpu_custom_call.1} parent=11 // pred_check_branch
          %313 = sbr.rel (%p311) target = $region32
        $region31: #{tpu_custom_call.1} parent=11 // pred_region
          _
        $region32: #{tpu_custom_call.1} parent=11 // pred_fallthru
          _
        // Predicated region
        $region33: #{tpu_custom_call.1} parent=11 // pred_check
          %p314 = pneg %p174
        $region34: #{tpu_custom_call.1} parent=11 // pred_check_branch
          %316 = sbr.rel (%p314) target = $region36
        $region35: #{tpu_custom_call.1} parent=11 // pred_region
          _
        $region36: #{tpu_custom_call.1} parent=11 // pred_fallthru
          _
        // Predicated region
        $region37: #{tpu_custom_call.1} parent=11 // pred_check
          %p317 = pneg %p195
        $region38: #{tpu_custom_call.1} parent=11 // pred_check_branch
          %319 = sbr.rel (%p317) target = $region40
        $region39: #{tpu_custom_call.1} parent=11 // pred_region
          %s321 = ssub.s32 4096, 4096
          %322 = vsyncadd [#allocation5], %s321
          %s323 = sshll.u32 [#allocation4], 4
          %s324 = int_to_ptr.vmem [resolvable:$true] %s323
          %329 = dma.hbm_to_vmem [thread:$0]  %s7, 4096, %s324, [#allocation5], 128, 128, 8
        $region40: #{tpu_custom_call.1} parent=11 // pred_fallthru
          _
        // Predicated region
        $region41: #{tpu_custom_call.1} parent=11 // pred_check
          %p330 = pneg %p216
        $region42: #{tpu_custom_call.1} parent=11 // pred_check_branch
          %332 = sbr.rel (%p330) target = $region44
        $region43: #{tpu_custom_call.1} parent=11 // pred_region
          _
        $region44: #{tpu_custom_call.1} parent=11 // pred_fallthru
          _
        // Predicated region
        $region45: #{tpu_custom_call.1} parent=11 // pred_check
          %p333 = pneg %p237
        $region46: #{tpu_custom_call.1} parent=11 // pred_check_branch
          %335 = sbr.rel (%p333) target = $region48
        $region47: #{tpu_custom_call.1} parent=11 // pred_region
          %s337 = ssub.s32 1024, 1024
          %338 = vsyncadd [#allocation8], %s337
          %s339 = sshll.u32 [#allocation7], 4
          %s340 = int_to_ptr.vmem [resolvable:$true] %s339
          %345 = dma.hbm_to_vmem [thread:$0]  %s9, 1024, %s340, [#allocation8], 128, 128, 8
        $region48: #{tpu_custom_call.1} parent=11 // pred_fallthru
          _
        // Predicated region
        $region49: #{tpu_custom_call.1} parent=11 // pred_check
          %p346 = pneg %p258
        $region50: #{tpu_custom_call.1} parent=11 // pred_check_branch
          %348 = sbr.rel (%p346) target = $region52
        $region51: #{tpu_custom_call.1} parent=11 // pred_region
          _
        $region52: #{tpu_custom_call.1} parent=11 // pred_fallthru
          _
      $region12: #{tpu_custom_call.1} parent=5 // pred_fallthru
        _
      %p349 = scmp.lt.s32.totalorder %s22, 2
      // Predicated region
      $region53: #{tpu_custom_call.1} parent=5 // pred_check
        %p350 = pneg %p349
      $region54: #{tpu_custom_call.1} parent=5 // pred_check_branch
        %352 = sbr.rel (%p350) target = $region56
      $region55: #{tpu_custom_call.1} parent=5 // pred_region
        // Predicated region
        $region57: #{tpu_custom_call.1} parent=55 // pred_check
          %p353 = pneg %p42
        $region58: #{tpu_custom_call.1} parent=55 // pred_check_branch
          %355 = sbr.rel (%p353) target = $region60
        $region59: #{tpu_custom_call.1} parent=55 // pred_region
          %s356 = smul.u32 8, %s22
          %p357 = scmp.lt.s32.totalorder %s356, 15
          %s358 = scalar_select %p357, %s356, 15
          %s359 = smul.addr %s358, 8
          %s360 = scalar_lea.vmem %s0, %s359
          %s361 = smul.u32 8, %s22
        $region60: #{tpu_custom_call.1} parent=55 // pred_fallthru
          _
      $region56: #{tpu_custom_call.1} parent=5 // pred_fallthru
        _
      %p362 = scmp.le.s32.totalorder 1, %s22
      %p363 = scmp.lt.s32.totalorder %s22, 3
      %p364 = pnand %p362, %p363
      %p365 = pneg %p364
      // Predicated region
      $region61: #{tpu_custom_call.1} parent=5 // pred_check
        _
      $region62: #{tpu_custom_call.1} parent=5 // pred_check_branch
        %367 = sbr.rel (%p364) target = $region64
      $region63: #{tpu_custom_call.1} parent=5 // pred_region
        %s368 = ssub.s32 %s22, 1
        // Predicated region
        $region65: #{tpu_custom_call.1} parent=63 // pred_check
          %p369 = pneg %p195
        $region66: #{tpu_custom_call.1} parent=63 // pred_check_branch
          %371 = sbr.rel (%p369) target = $region68
        $region67: #{tpu_custom_call.1} parent=63 // pred_region
          %372 = dma.done [#allocation5], 4096
        $region68: #{tpu_custom_call.1} parent=63 // pred_fallthru
          _
        // Predicated region
        $region69: #{tpu_custom_call.1} parent=63 // pred_check
          %p373 = pneg %p237
        $region70: #{tpu_custom_call.1} parent=63 // pred_check_branch
          %375 = sbr.rel (%p373) target = $region72
        $region71: #{tpu_custom_call.1} parent=63 // pred_region
          %376 = dma.done [#allocation8], 1024
        $region72: #{tpu_custom_call.1} parent=63 // pred_fallthru
          _
        %s377 = smul.u32 8, %s27
        %p378 = scmp.lt.s32.totalorder %s377, 15
        %s379 = scalar_select %p378, %s377, 15
        %s380 = smul.addr %s379, 8
        %s381 = scalar_lea.vmem %s0, %s380
        %p382 = pneg %p48
        %p383 = pneg %p45
        %p384 = pneg %p69
        %p385 = pneg %p66
        %p386 = pneg %p90
        %p387 = pneg %p87
        %p388 = pneg %p111
        %p389 = pneg %p108
        %p390 = pneg %p132
        %p391 = pneg %p129
        %p392 = pneg %p153
        %p393 = pneg %p150
        %p394 = pneg %p174
        %p395 = pneg %p171
        %p396 = pneg %p195
        %p397 = pneg %p192
        %p398 = pneg %p216
        %p399 = pneg %p213
        %p400 = pneg %p237
        %p401 = pneg %p234
        %p402 = pneg %p258
        %p403 = pneg %p255
        %p404 = pneg %p284
        %p405 = pneg %p281
        %s406 = sand.u32 %s271, 1
        %s407 = scalar_lea.sflag [#allocation6], %s406
        %s408 = sand.u32 %s271, 1
        %s409 = smul.addr %s408, 8
        %s410 = scalar_lea.vmem [#allocation9], %s409
        %s411 = smul.u32 8, %s27
        %p412 = scmp.lt.s32.totalorder %s411, 15
        %s413 = scalar_select %p412, %s411, 15
        %s414 = smul.addr %s413, 8
        %s415 = scalar_lea.vmem %s0, %s414
        %s416 = smul.u32 8, %s27
        %vm417 = vcmask 270336
        %418 = vst.msk [vmem:[#allocation2] sm:$0x1] %vm417, 0.0
        %419 = vst.msk [vmem:[#allocation2 + $0x10] sm:$0x1] %vm417, 0.0
        %420 = vst.msk [vmem:[#allocation2 + $0x20] sm:$0x1] %vm417, 0.0
        %421 = vst.msk [vmem:[#allocation2 + $0x30] sm:$0x1] %vm417, 0.0
        %422 = vst.msk [vmem:[#allocation2 + $0x40] sm:$0x1] %vm417, 0.0
        %423 = vst.msk [vmem:[#allocation2 + $0x50] sm:$0x1] %vm417, 0.0
        %424 = vst.msk [vmem:[#allocation2 + $0x60] sm:$0x1] %vm417, 0.0
        %425 = vst.msk [vmem:[#allocation2 + $0x70] sm:$0x1] %vm417, 0.0
        %426 = vst.msk [vmem:[#allocation2 + $0x9] sm:$0x1] %vm417, 0.0
        %427 = vst.msk [vmem:[#allocation2 + $0x19] sm:$0x1] %vm417, 0.0
        %428 = vst.msk [vmem:[#allocation2 + $0x29] sm:$0x1] %vm417, 0.0
        %429 = vst.msk [vmem:[#allocation2 + $0x39] sm:$0x1] %vm417, 0.0
        %430 = vst.msk [vmem:[#allocation2 + $0x49] sm:$0x1] %vm417, 0.0
        %431 = vst.msk [vmem:[#allocation2 + $0x59] sm:$0x1] %vm417, 0.0
        %432 = vst.msk [vmem:[#allocation2 + $0x69] sm:$0x1] %vm417, 0.0
        %433 = vst.msk [vmem:[#allocation2 + $0x79] sm:$0x1] %vm417, 0.0
        %v434 = vld [vmem:[%s415] sm:$0xff]
        %v435 = vld [vmem:[%s415 + $0x8] sm:$0xff]
        %v436 = vld [vmem:[%s415 + $0x10] sm:$0xff]
        %v437 = vld [vmem:[%s415 + $0x18] sm:$0xff]
        %v438 = vld [vmem:[%s415 + $0x20] sm:$0xff]
        %v439 = vld [vmem:[%s415 + $0x28] sm:$0xff]
        %v440 = vld [vmem:[%s415 + $0x30] sm:$0xff]
        %v441 = vld [vmem:[%s415 + $0x38] sm:$0xff]
        %vm442 = vcmask 277504
        %443 = vst.msk [vmem:[#allocation2 + $0x1] sm:$0xff] %vm442, %v434
        %444 = vst.msk [vmem:[#allocation2 + $0x11] sm:$0xff] %vm442, %v435
        %445 = vst.msk [vmem:[#allocation2 + $0x21] sm:$0xff] %vm442, %v436
        %446 = vst.msk [vmem:[#allocation2 + $0x31] sm:$0xff] %vm442, %v437
        %447 = vst.msk [vmem:[#allocation2 + $0x41] sm:$0xff] %vm442, %v438
        %448 = vst.msk [vmem:[#allocation2 + $0x51] sm:$0xff] %vm442, %v439
        %449 = vst.msk [vmem:[#allocation2 + $0x61] sm:$0xff] %vm442, %v440
        %450 = vst.msk [vmem:[#allocation2 + $0x71] sm:$0xff] %vm442, %v441
        %v451 = vld [vmem:[#allocation2] sm:$0xff]
        %v452 = vld [vmem:[#allocation2 + $0x10] sm:$0xff]
        %v453 = vld [vmem:[#allocation2 + $0x20] sm:$0xff]
        %v454 = vld [vmem:[#allocation2 + $0x30] sm:$0xff]
        %v455 = vld [vmem:[#allocation2 + $0x40] sm:$0xff]
        %v456 = vld [vmem:[#allocation2 + $0x50] sm:$0xff]
        %v457 = vld [vmem:[#allocation2 + $0x60] sm:$0xff]
        %v458 = vld [vmem:[#allocation2 + $0x70] sm:$0xff]
        %v459 = vld [vmem:[#allocation2 + $0x1] sm:$0xff]
        %v460 = vld [vmem:[#allocation2 + $0x11] sm:$0xff]
        %v461 = vld [vmem:[#allocation2 + $0x21] sm:$0xff]
        %v462 = vld [vmem:[#allocation2 + $0x31] sm:$0xff]
        %v463 = vld [vmem:[#allocation2 + $0x41] sm:$0xff]
        %v464 = vld [vmem:[#allocation2 + $0x51] sm:$0xff]
        %v465 = vld [vmem:[#allocation2 + $0x61] sm:$0xff]
        %v466 = vld [vmem:[#allocation2 + $0x71] sm:$0xff]
        %v467 = vld [vmem:[#allocation2 + $0x2] sm:$0xff]
        %v468 = vld [vmem:[#allocation2 + $0x12] sm:$0xff]
        %v469 = vld [vmem:[#allocation2 + $0x22] sm:$0xff]
        %v470 = vld [vmem:[#allocation2 + $0x32] sm:$0xff]
        %v471 = vld [vmem:[#allocation2 + $0x42] sm:$0xff]
        %v472 = vld [vmem:[#allocation2 + $0x52] sm:$0xff]
        %v473 = vld [vmem:[#allocation2 + $0x62] sm:$0xff]
        %v474 = vld [vmem:[#allocation2 + $0x72] sm:$0xff]
        %v475 = vld [vmem:[%s1] sm:$0xff]
        %v476 = vld [vmem:[%s1 + $0x8] sm:$0xff]
        %v477 = vld [vmem:[%s1 + $0x10] sm:$0xff]
        %v478 = vld [vmem:[%s1 + $0x18] sm:$0xff]
        %v479 = vld [vmem:[%s1 + $0x20] sm:$0x3]
        %s480 = scalar_lea.vmem %s1, 40
        %v481 = vld [vmem:[%s480] sm:$0xff]
        %v482 = vld [vmem:[%s480 + $0x8] sm:$0xff]
        %v483 = vld [vmem:[%s480 + $0x10] sm:$0xff]
        %v484 = vld [vmem:[%s480 + $0x18] sm:$0xff]
        %v485 = vld [vmem:[%s480 + $0x20] sm:$0x3]
        %v487 = vsel %vm442, %v459, 0
        %v490 = vsel %vm442, %v460, 0
        %v493 = vsel %vm442, %v461, 0
        %v496 = vsel %vm442, %v462, 0
        %v499 = vsel %vm442, %v463, 0
        %v502 = vsel %vm442, %v464, 0
        %v505 = vsel %vm442, %v465, 0
        %v508 = vsel %vm442, %v466, 0
        %vm510 = vcmask 1041408
        %v512 = vsel %vm510, %v485, 0
        %514 = vmatprep.subr.mxu0 0.0
        %515 = vmatpush1.msra.mxu0 %v481
        %516 = vmatprep.subr.mxu0 0.0
        %517 = vmatpush1.msra.mxu0 %v482
        %518 = vmatprep.subr.mxu0 0.0
        %519 = vmatpush1.msra.mxu0 %v483
        %520 = vmatprep.subr.mxu0 0.0
        %521 = vmatpush1.msra.mxu0 %v484
        %522 = vmatprep.subr.mxu0 0.0
        %523 = vmatpush1.msra.mxu0 %v512
        %524 = vmatprep.subr.mxu0 0.0
        %525 = vmatpush1.msra.mxu0 0.0
        %526 = vmatprep.subr.mxu0 0.0
        %527 = vmatpush1.msra.mxu0 0.0
        %528 = vmatprep.subr.mxu0 0.0
        %529 = vmatpush1.msra.mxu0 0.0
        %530 = vmatprep.subr.mxu0 0.0
        %531 = vmatpush1.msra.mxu0 0.0
        %532 = vmatprep.subr.mxu0 0.0
        %533 = vmatpush1.msra.mxu0 0.0
        %534 = vmatprep.subr.mxu0 0.0
        %535 = vmatpush1.msra.mxu0 0.0
        %536 = vmatprep.subr.mxu0 0.0
        %537 = vmatpush1.msra.mxu0 0.0
        %538 = vmatprep.subr.mxu0 0.0
        %539 = vmatpush1.msra.mxu0 0.0
        %540 = vmatprep.subr.mxu0 0.0
        %541 = vmatpush1.msra.mxu0 0.0
        %542 = vmatprep.subr.mxu0 0.0
        %543 = vmatpush1.msra.mxu0 0.0
        %544 = vmatprep.subr.mxu0 0.0
        %545 = vmatpush1.msra.mxu0 0.0
        %546 = vmatprep.subr.mxu0 0.0
        %547 = vmatpush1.msra.mxu0 0.0
        %548 = vmatprep.subr.mxu0 0.0
        %549 = vmatpush1.msra.mxu0 0.0
        %550 = vmatprep.subr.mxu0 0.0
        %551 = vmatpush1.msra.mxu0 0.0
        %552 = vmatprep.subr.mxu0 0.0
        %553 = vmatpush1.msra.mxu0 0.0
        %554 = vmatprep.subr.mxu0 0.0
        %555 = vmatpush1.msra.mxu0 0.0
        %556 = vmatprep.subr.mxu0 0.0
        %557 = vmatpush1.msra.mxu0 0.0
        %558 = vmatprep.subr.mxu0 0.0
        %559 = vmatpush1.msra.mxu0 0.0
        %560 = vmatprep.subr.mxu0 0.0
        %561 = vmatpush1.msra.mxu0 0.0
        %562 = vmatprep.subr.mxu0 0.0
        %563 = vmatpush1.msra.mxu0 0.0
        %564 = vmatprep.subr.mxu0 0.0
        %565 = vmatpush1.msra.mxu0 0.0
        %566 = vmatprep.subr.mxu0 0.0
        %567 = vmatpush1.msra.mxu0 0.0
        %568 = vmatprep.subr.mxu0 0.0
        %569 = vmatpush1.msra.mxu0 0.0
        %570 = vmatprep.subr.mxu0 0.0
        %571 = vmatpush1.msra.mxu0 0.0
        %572 = vmatprep.subr.mxu0 0.0
        %573 = vmatpush1.msra.mxu0 0.0
        %574 = vmatprep.subr.mxu0 0.0
        %575 = vmatpush1.msra.mxu0 0.0
        %576 = vmatprep.subr.mxu0 0.0
        %577 = vmatpush1.msra.mxu0 0.0
        %578 = vmatprep.mubr.f32.mxu0 0.0
        %579 = vmatmul.mubr.f32.gmra.mrb[0].mxu0 %v487
        %v580 = vpop.f32.mrb[0].mxu0
        %v581 = vadd.f32 0.0, %v580
        %v582 = vpop.f32.mrb[0].mxu0
        %583 = vmatprep.mubr.f32.mxu0 0.0
        %584 = vmatmul.mubr.f32.gmra.mrb[0].mxu0 %v490
        %v585 = vpop.f32.mrb[0].mxu0
        %v586 = vadd.f32 0.0, %v585
        %v587 = vpop.f32.mrb[0].mxu0
        %588 = vmatprep.mubr.f32.mxu0 0.0
        %589 = vmatmul.mubr.f32.gmra.mrb[0].mxu0 %v493
        %v590 = vpop.f32.mrb[0].mxu0
        %v591 = vadd.f32 0.0, %v590
        %v592 = vpop.f32.mrb[0].mxu0
        %593 = vmatprep.mubr.f32.mxu0 0.0
        %594 = vmatmul.mubr.f32.gmra.mrb[0].mxu0 %v496
        %v595 = vpop.f32.mrb[0].mxu0
        %v596 = vadd.f32 0.0, %v595
        %v597 = vpop.f32.mrb[0].mxu0
        %598 = vmatprep.mubr.f32.mxu0 0.0
        %599 = vmatmul.mubr.f32.gmra.mrb[0].mxu0 %v499
        %v600 = vpop.f32.mrb[0].mxu0
        %v601 = vadd.f32 0.0, %v600
        %v602 = vpop.f32.mrb[0].mxu0
        %603 = vmatprep.mubr.f32.mxu0 0.0
        %604 = vmatmul.mubr.f32.gmra.mrb[0].mxu0 %v502
        %v605 = vpop.f32.mrb[0].mxu0
        %v606 = vadd.f32 0.0, %v605
        %v607 = vpop.f32.mrb[0].mxu0
        %608 = vmatprep.mubr.f32.mxu0 0.0
        %609 = vmatmul.mubr.f32.gmra.mrb[0].mxu0 %v505
        %v610 = vpop.f32.mrb[0].mxu0
        %v611 = vadd.f32 0.0, %v610
        %v612 = vpop.f32.mrb[0].mxu0
        %613 = vmatprep.mubr.f32.mxu0 0.0
        %614 = vmatmul.mubr.f32.gmra.mrb[0].mxu0 %v508
        %v615 = vpop.f32.mrb[0].mxu0
        %v616 = vadd.f32 0.0, %v615
        %v617 = vpop.f32.mrb[0].mxu0
        %618 = vdwg.mxu0
        %v620 = vsel %vm442, %v451, 0
        %v623 = vsel %vm442, %v452, 0
        %v626 = vsel %vm442, %v453, 0
        %v629 = vsel %vm442, %v454, 0
        %v632 = vsel %vm442, %v455, 0
        %v635 = vsel %vm442, %v456, 0
        %v638 = vsel %vm442, %v457, 0
        %v641 = vsel %vm442, %v458, 0
        %v644 = vsel %vm510, %v479, 0
        %646 = vmatprep.subr.mxu0 0.0
        %647 = vmatpush1.msra.mxu0 %v475
        %648 = vmatprep.subr.mxu0 0.0
        %649 = vmatpush1.msra.mxu0 %v476
        %650 = vmatprep.subr.mxu0 0.0
        %651 = vmatpush1.msra.mxu0 %v477
        %652 = vmatprep.subr.mxu0 0.0
        %653 = vmatpush1.msra.mxu0 %v478
        %654 = vmatprep.subr.mxu0 0.0
        %655 = vmatpush1.msra.mxu0 %v644
        %656 = vmatprep.subr.mxu0 0.0
        %657 = vmatpush1.msra.mxu0 0.0
        %658 = vmatprep.subr.mxu0 0.0
        %659 = vmatpush1.msra.mxu0 0.0
        %660 = vmatprep.subr.mxu0 0.0
        %661 = vmatpush1.msra.mxu0 0.0
        %662 = vmatprep.subr.mxu0 0.0
        %663 = vmatpush1.msra.mxu0 0.0
        %664 = vmatprep.subr.mxu0 0.0
        %665 = vmatpush1.msra.mxu0 0.0
        %666 = vmatprep.subr.mxu0 0.0
        %667 = vmatpush1.msra.mxu0 0.0
        %668 = vmatprep.subr.mxu0 0.0
        %669 = vmatpush1.msra.mxu0 0.0
        %670 = vmatprep.subr.mxu0 0.0
        %671 = vmatpush1.msra.mxu0 0.0
        %672 = vmatprep.subr.mxu0 0.0
        %673 = vmatpush1.msra.mxu0 0.0
        %674 = vmatprep.subr.mxu0 0.0
        %675 = vmatpush1.msra.mxu0 0.0
        %676 = vmatprep.subr.mxu0 0.0
        %677 = vmatpush1.msra.mxu0 0.0
        %678 = vmatprep.subr.mxu0 0.0
        %679 = vmatpush1.msra.mxu0 0.0
        %680 = vmatprep.subr.mxu0 0.0
        %681 = vmatpush1.msra.mxu0 0.0
        %682 = vmatprep.subr.mxu0 0.0
        %683 = vmatpush1.msra.mxu0 0.0
        %684 = vmatprep.subr.mxu0 0.0
        %685 = vmatpush1.msra.mxu0 0.0
        %686 = vmatprep.subr.mxu0 0.0
        %687 = vmatpush1.msra.mxu0 0.0
        %688 = vmatprep.subr.mxu0 0.0
        %689 = vmatpush1.msra.mxu0 0.0
        %690 = vmatprep.subr.mxu0 0.0
        %691 = vmatpush1.msra.mxu0 0.0
        %692 = vmatprep.subr.mxu0 0.0
        %693 = vmatpush1.msra.mxu0 0.0
        %694 = vmatprep.subr.mxu0 0.0
        %695 = vmatpush1.msra.mxu0 0.0
        %696 = vmatprep.subr.mxu0 0.0
        %697 = vmatpush1.msra.mxu0 0.0
        %698 = vmatprep.subr.mxu0 0.0
        %699 = vmatpush1.msra.mxu0 0.0
        %700 = vmatprep.subr.mxu0 0.0
        %701 = vmatpush1.msra.mxu0 0.0
        %702 = vmatprep.subr.mxu0 0.0
        %703 = vmatpush1.msra.mxu0 0.0
        %704 = vmatprep.subr.mxu0 0.0
        %705 = vmatpush1.msra.mxu0 0.0
        %706 = vmatprep.subr.mxu0 0.0
        %707 = vmatpush1.msra.mxu0 0.0
        %708 = vmatprep.subr.mxu0 0.0
        %709 = vmatpush1.msra.mxu0 0.0
        %710 = vmatprep.mubr.f32.mxu0 0.0
        %711 = vmatmul.mubr.f32.gmra.mrb[0].mxu0 %v620
        %v712 = vpop.f32.mrb[0].mxu0
        %v713 = vadd.f32 %v581, %v712
        %v714 = vpop.f32.mrb[0].mxu0
        %715 = vmatprep.mubr.f32.mxu0 0.0
        %716 = vmatmul.mubr.f32.gmra.mrb[0].mxu0 %v623
        %v717 = vpop.f32.mrb[0].mxu0
        %v718 = vadd.f32 %v586, %v717
        %v719 = vpop.f32.mrb[0].mxu0
        %720 = vmatprep.mubr.f32.mxu0 0.0
        %721 = vmatmul.mubr.f32.gmra.mrb[0].mxu0 %v626
        %v722 = vpop.f32.mrb[0].mxu0
        %v723 = vadd.f32 %v591, %v722
        %v724 = vpop.f32.mrb[0].mxu0
        %725 = vmatprep.mubr.f32.mxu0 0.0
        %726 = vmatmul.mubr.f32.gmra.mrb[0].mxu0 %v629
        %v727 = vpop.f32.mrb[0].mxu0
        %v728 = vadd.f32 %v596, %v727
        %v729 = vpop.f32.mrb[0].mxu0
        %730 = vmatprep.mubr.f32.mxu0 0.0
        %731 = vmatmul.mubr.f32.gmra.mrb[0].mxu0 %v632
        %v732 = vpop.f32.mrb[0].mxu0
        %v733 = vadd.f32 %v601, %v732
        %v734 = vpop.f32.mrb[0].mxu0
        %735 = vmatprep.mubr.f32.mxu0 0.0
        %736 = vmatmul.mubr.f32.gmra.mrb[0].mxu0 %v635
        %v737 = vpop.f32.mrb[0].mxu0
        %v738 = vadd.f32 %v606, %v737
        %v739 = vpop.f32.mrb[0].mxu0
        %740 = vmatprep.mubr.f32.mxu0 0.0
        %741 = vmatmul.mubr.f32.gmra.mrb[0].mxu0 %v638
        %v742 = vpop.f32.mrb[0].mxu0
        %v743 = vadd.f32 %v611, %v742
        %v744 = vpop.f32.mrb[0].mxu0
        %745 = vmatprep.mubr.f32.mxu0 0.0
        %746 = vmatmul.mubr.f32.gmra.mrb[0].mxu0 %v641
        %v747 = vpop.f32.mrb[0].mxu0
        %v748 = vadd.f32 %v616, %v747
        %v749 = vpop.f32.mrb[0].mxu0
        %750 = vdwg.mxu0
        %s751 = scalar_lea.vmem %s1, 80
        %v752 = vld [vmem:[%s751] sm:$0xff]
        %v753 = vld [vmem:[%s751 + $0x8] sm:$0xff]
        %v754 = vld [vmem:[%s751 + $0x10] sm:$0xff]
        %v755 = vld [vmem:[%s751 + $0x18] sm:$0xff]
        %v756 = vld [vmem:[%s751 + $0x20] sm:$0x3]
        %v758 = vsel %vm442, %v467, 0
        %v761 = vsel %vm442, %v468, 0
        %v764 = vsel %vm442, %v469, 0
        %v767 = vsel %vm442, %v470, 0
        %v770 = vsel %vm442, %v471, 0
        %v773 = vsel %vm442, %v472, 0
        %v776 = vsel %vm442, %v473, 0
        %v779 = vsel %vm442, %v474, 0
        %v782 = vsel %vm510, %v756, 0
        %784 = vmatprep.subr.mxu0 0.0
        %785 = vmatpush1.msra.mxu0 %v752
        %786 = vmatprep.subr.mxu0 0.0
        %787 = vmatpush1.msra.mxu0 %v753
        %788 = vmatprep.subr.mxu0 0.0
        %789 = vmatpush1.msra.mxu0 %v754
        %790 = vmatprep.subr.mxu0 0.0
        %791 = vmatpush1.msra.mxu0 %v755
        %792 = vmatprep.subr.mxu0 0.0
        %793 = vmatpush1.msra.mxu0 %v782
        %794 = vmatprep.subr.mxu0 0.0
        %795 = vmatpush1.msra.mxu0 0.0
        %796 = vmatprep.subr.mxu0 0.0
        %797 = vmatpush1.msra.mxu0 0.0
        %798 = vmatprep.subr.mxu0 0.0
        %799 = vmatpush1.msra.mxu0 0.0
        %800 = vmatprep.subr.mxu0 0.0
        %801 = vmatpush1.msra.mxu0 0.0
        %802 = vmatprep.subr.mxu0 0.0
        %803 = vmatpush1.msra.mxu0 0.0
        %804 = vmatprep.subr.mxu0 0.0
        %805 = vmatpush1.msra.mxu0 0.0
        %806 = vmatprep.subr.mxu0 0.0
        %807 = vmatpush1.msra.mxu0 0.0
        %808 = vmatprep.subr.mxu0 0.0
        %809 = vmatpush1.msra.mxu0 0.0
        %810 = vmatprep.subr.mxu0 0.0
        %811 = vmatpush1.msra.mxu0 0.0
        %812 = vmatprep.subr.mxu0 0.0
        %813 = vmatpush1.msra.mxu0 0.0
        %814 = vmatprep.subr.mxu0 0.0
        %815 = vmatpush1.msra.mxu0 0.0
        %816 = vmatprep.subr.mxu0 0.0
        %817 = vmatpush1.msra.mxu0 0.0
        %818 = vmatprep.subr.mxu0 0.0
        %819 = vmatpush1.msra.mxu0 0.0
        %820 = vmatprep.subr.mxu0 0.0
        %821 = vmatpush1.msra.mxu0 0.0
        %822 = vmatprep.subr.mxu0 0.0
        %823 = vmatpush1.msra.mxu0 0.0
        %824 = vmatprep.subr.mxu0 0.0
        %825 = vmatpush1.msra.mxu0 0.0
        %826 = vmatprep.subr.mxu0 0.0
        %827 = vmatpush1.msra.mxu0 0.0
        %828 = vmatprep.subr.mxu0 0.0
        %829 = vmatpush1.msra.mxu0 0.0
        %830 = vmatprep.subr.mxu0 0.0
        %831 = vmatpush1.msra.mxu0 0.0
        %832 = vmatprep.subr.mxu0 0.0
        %833 = vmatpush1.msra.mxu0 0.0
        %834 = vmatprep.subr.mxu0 0.0
        %835 = vmatpush1.msra.mxu0 0.0
        %836 = vmatprep.subr.mxu0 0.0
        %837 = vmatpush1.msra.mxu0 0.0
        %838 = vmatprep.subr.mxu0 0.0
        %839 = vmatpush1.msra.mxu0 0.0
        %840 = vmatprep.subr.mxu0 0.0
        %841 = vmatpush1.msra.mxu0 0.0
        %842 = vmatprep.subr.mxu0 0.0
        %843 = vmatpush1.msra.mxu0 0.0
        %844 = vmatprep.subr.mxu0 0.0
        %845 = vmatpush1.msra.mxu0 0.0
        %846 = vmatprep.subr.mxu0 0.0
        %847 = vmatpush1.msra.mxu0 0.0
        %848 = vmatprep.mubr.f32.mxu0 0.0
        %849 = vmatmul.mubr.f32.gmra.mrb[0].mxu0 %v758
        %v850 = vpop.f32.mrb[0].mxu0
        %v851 = vadd.f32 0.0, %v850
        %v852 = vpop.f32.mrb[0].mxu0
        %853 = vmatprep.mubr.f32.mxu0 0.0
        %854 = vmatmul.mubr.f32.gmra.mrb[0].mxu0 %v761
        %v855 = vpop.f32.mrb[0].mxu0
        %v856 = vadd.f32 0.0, %v855
        %v857 = vpop.f32.mrb[0].mxu0
        %858 = vmatprep.mubr.f32.mxu0 0.0
        %859 = vmatmul.mubr.f32.gmra.mrb[0].mxu0 %v764
        %v860 = vpop.f32.mrb[0].mxu0
        %v861 = vadd.f32 0.0, %v860
        %v862 = vpop.f32.mrb[0].mxu0
        %863 = vmatprep.mubr.f32.mxu0 0.0
        %864 = vmatmul.mubr.f32.gmra.mrb[0].mxu0 %v767
        %v865 = vpop.f32.mrb[0].mxu0
        %v866 = vadd.f32 0.0, %v865
        %v867 = vpop.f32.mrb[0].mxu0
        %868 = vmatprep.mubr.f32.mxu0 0.0
        %869 = vmatmul.mubr.f32.gmra.mrb[0].mxu0 %v770
        %v870 = vpop.f32.mrb[0].mxu0
        %v871 = vadd.f32 0.0, %v870
        %v872 = vpop.f32.mrb[0].mxu0
        %873 = vmatprep.mubr.f32.mxu0 0.0
        %874 = vmatmul.mubr.f32.gmra.mrb[0].mxu0 %v773
        %v875 = vpop.f32.mrb[0].mxu0
        %v876 = vadd.f32 0.0, %v875
        %v877 = vpop.f32.mrb[0].mxu0
        %878 = vmatprep.mubr.f32.mxu0 0.0
        %879 = vmatmul.mubr.f32.gmra.mrb[0].mxu0 %v776
        %v880 = vpop.f32.mrb[0].mxu0
        %v881 = vadd.f32 0.0, %v880
        %v882 = vpop.f32.mrb[0].mxu0
        %883 = vmatprep.mubr.f32.mxu0 0.0
        %884 = vmatmul.mubr.f32.gmra.mrb[0].mxu0 %v779
        %v885 = vpop.f32.mrb[0].mxu0
        %v886 = vadd.f32 0.0, %v885
        %v887 = vpop.f32.mrb[0].mxu0
        %888 = vdwg.mxu0
        %v889 = vadd.f32 %v713, %v851
        %v890 = vadd.f32 %v718, %v856
        %v891 = vadd.f32 %v723, %v861
        %v892 = vadd.f32 %v728, %v866
        %v893 = vadd.f32 %v733, %v871
        %v894 = vadd.f32 %v738, %v876
        %v895 = vadd.f32 %v743, %v881
        %v896 = vadd.f32 %v748, %v886
        %v897 = vld [vmem:[%s2] sm:$0x1]
        %v899 = vlaneseq
        %v900 = vshrl.u32 %v899, 7
        %v901 = vsub.s32 0, %v900
        %v902 = vrot.slane %v897, %v901
        %v904 = vmul.f32 %v889, %v902
        %v905 = vmul.f32 %v890, %v902
        %v906 = vmul.f32 %v891, %v902
        %v907 = vmul.f32 %v892, %v902
        %v908 = vmul.f32 %v893, %v902
        %v909 = vmul.f32 %v894, %v902
        %v910 = vmul.f32 %v895, %v902
        %v911 = vmul.f32 %v896, %v902
        %v912 = vld [vmem:[%s3] sm:$0x1]
        %v914 = vlaneseq
        %v915 = vshrl.u32 %v914, 7
        %v916 = vsub.s32 0, %v915
        %v917 = vrot.slane %v912, %v916
        %v919 = vadd.f32 %v904, %v917
        %v920 = vadd.f32 %v905, %v917
        %v921 = vadd.f32 %v906, %v917
        %v922 = vadd.f32 %v907, %v917
        %v923 = vadd.f32 %v908, %v917
        %v924 = vadd.f32 %v909, %v917
        %v925 = vadd.f32 %v910, %v917
        %v926 = vadd.f32 %v911, %v917
        %v927 = vmax.f32 %v919, 0.0
        %v928 = vmax.f32 %v920, 0.0
        %v929 = vmax.f32 %v921, 0.0
        %v930 = vmax.f32 %v922, 0.0
        %v931 = vmax.f32 %v923, 0.0
        %v932 = vmax.f32 %v924, 0.0
        %v933 = vmax.f32 %v925, 0.0
        %v934 = vmax.f32 %v926, 0.0
        %vm935 = vcmask 253952
        %936 = vst.msk [vmem:[#allocation3] sm:$0x1] %vm935, 0.0
        %937 = vst.msk [vmem:[#allocation3 + $0x10] sm:$0x1] %vm935, 0.0
        %938 = vst.msk [vmem:[#allocation3 + $0x20] sm:$0x1] %vm935, 0.0
        %939 = vst.msk [vmem:[#allocation3 + $0x30] sm:$0x1] %vm935, 0.0
        %940 = vst.msk [vmem:[#allocation3 + $0x40] sm:$0x1] %vm935, 0.0
        %941 = vst.msk [vmem:[#allocation3 + $0x50] sm:$0x1] %vm935, 0.0
        %942 = vst.msk [vmem:[#allocation3 + $0x60] sm:$0x1] %vm935, 0.0
        %943 = vst.msk [vmem:[#allocation3 + $0x70] sm:$0x1] %vm935, 0.0
        %944 = vst.msk [vmem:[#allocation3 + $0x9] sm:$0x1] %vm935, 0.0
        %945 = vst.msk [vmem:[#allocation3 + $0x19] sm:$0x1] %vm935, 0.0
        %946 = vst.msk [vmem:[#allocation3 + $0x29] sm:$0x1] %vm935, 0.0
        %947 = vst.msk [vmem:[#allocation3 + $0x39] sm:$0x1] %vm935, 0.0
        %948 = vst.msk [vmem:[#allocation3 + $0x49] sm:$0x1] %vm935, 0.0
        %949 = vst.msk [vmem:[#allocation3 + $0x59] sm:$0x1] %vm935, 0.0
        %950 = vst.msk [vmem:[#allocation3 + $0x69] sm:$0x1] %vm935, 0.0
        %951 = vst.msk [vmem:[#allocation3 + $0x79] sm:$0x1] %vm935, 0.0
        %vm952 = vcmask 261120
        %953 = vst.msk [vmem:[#allocation3 + $0x1] sm:$0xff] %vm952, %v927
        %954 = vst.msk [vmem:[#allocation3 + $0x11] sm:$0xff] %vm952, %v928
        %955 = vst.msk [vmem:[#allocation3 + $0x21] sm:$0xff] %vm952, %v929
        %956 = vst.msk [vmem:[#allocation3 + $0x31] sm:$0xff] %vm952, %v930
        %957 = vst.msk [vmem:[#allocation3 + $0x41] sm:$0xff] %vm952, %v931
        %958 = vst.msk [vmem:[#allocation3 + $0x51] sm:$0xff] %vm952, %v932
        %959 = vst.msk [vmem:[#allocation3 + $0x61] sm:$0xff] %vm952, %v933
        %960 = vst.msk [vmem:[#allocation3 + $0x71] sm:$0xff] %vm952, %v934
        %v961 = vld [vmem:[#allocation3] sm:$0xff]
        %v962 = vld [vmem:[#allocation3 + $0x10] sm:$0xff]
        %v963 = vld [vmem:[#allocation3 + $0x20] sm:$0xff]
        %v964 = vld [vmem:[#allocation3 + $0x30] sm:$0xff]
        %v965 = vld [vmem:[#allocation3 + $0x40] sm:$0xff]
        %v966 = vld [vmem:[#allocation3 + $0x50] sm:$0xff]
        %v967 = vld [vmem:[#allocation3 + $0x60] sm:$0xff]
        %v968 = vld [vmem:[#allocation3 + $0x70] sm:$0xff]
        %v969 = vld [vmem:[#allocation3 + $0x1] sm:$0xff]
        %v970 = vld [vmem:[#allocation3 + $0x11] sm:$0xff]
        %v971 = vld [vmem:[#allocation3 + $0x21] sm:$0xff]
        %v972 = vld [vmem:[#allocation3 + $0x31] sm:$0xff]
        %v973 = vld [vmem:[#allocation3 + $0x41] sm:$0xff]
        %v974 = vld [vmem:[#allocation3 + $0x51] sm:$0xff]
        %v975 = vld [vmem:[#allocation3 + $0x61] sm:$0xff]
        %v976 = vld [vmem:[#allocation3 + $0x71] sm:$0xff]
        %v977 = vld [vmem:[#allocation3 + $0x2] sm:$0xff]
        %v978 = vld [vmem:[#allocation3 + $0x12] sm:$0xff]
        %v979 = vld [vmem:[#allocation3 + $0x22] sm:$0xff]
        %v980 = vld [vmem:[#allocation3 + $0x32] sm:$0xff]
        %v981 = vld [vmem:[#allocation3 + $0x42] sm:$0xff]
        %v982 = vld [vmem:[#allocation3 + $0x52] sm:$0xff]
        %v983 = vld [vmem:[#allocation3 + $0x62] sm:$0xff]
        %v984 = vld [vmem:[#allocation3 + $0x72] sm:$0xff]
        %v985 = vld [vmem:[%s4] sm:$0xff]
        %v986 = vld [vmem:[%s4 + $0x8] sm:$0xff]
        %v987 = vld [vmem:[%s4 + $0x10] sm:$0xff]
        %v988 = vld [vmem:[%s4 + $0x18] sm:$0xff]
        %s989 = scalar_lea.vmem %s4, 32
        %v990 = vld [vmem:[%s989] sm:$0xff]
        %v991 = vld [vmem:[%s989 + $0x8] sm:$0xff]
        %v992 = vld [vmem:[%s989 + $0x10] sm:$0xff]
        %v993 = vld [vmem:[%s989 + $0x18] sm:$0xff]
        %v995 = vsel %vm952, %v969, 0
        %v998 = vsel %vm952, %v970, 0
        %v1001 = vsel %vm952, %v971, 0
        %v1004 = vsel %vm952, %v972, 0
        %v1007 = vsel %vm952, %v973, 0
        %v1010 = vsel %vm952, %v974, 0
        %v1013 = vsel %vm952, %v975, 0
        %v1016 = vsel %vm952, %v976, 0
        %1018 = vmatprep.subr.mxu0 0.0
        %1019 = vmatpush1.msra.mxu0 %v990
        %1020 = vmatprep.subr.mxu0 0.0
        %1021 = vmatpush1.msra.mxu0 %v991
        %1022 = vmatprep.subr.mxu0 0.0
        %1023 = vmatpush1.msra.mxu0 %v992
        %1024 = vmatprep.subr.mxu0 0.0
        %1025 = vmatpush1.msra.mxu0 %v993
        %1026 = vmatprep.subr.mxu0 0.0
        %1027 = vmatpush1.msra.mxu0 0.0
        %1028 = vmatprep.subr.mxu0 0.0
        %1029 = vmatpush1.msra.mxu0 0.0
        %1030 = vmatprep.subr.mxu0 0.0
        %1031 = vmatpush1.msra.mxu0 0.0
        %1032 = vmatprep.subr.mxu0 0.0
        %1033 = vmatpush1.msra.mxu0 0.0
        %1034 = vmatprep.subr.mxu0 0.0
        %1035 = vmatpush1.msra.mxu0 0.0
        %1036 = vmatprep.subr.mxu0 0.0
        %1037 = vmatpush1.msra.mxu0 0.0
        %1038 = vmatprep.subr.mxu0 0.0
        %1039 = vmatpush1.msra.mxu0 0.0
        %1040 = vmatprep.subr.mxu0 0.0
        %1041 = vmatpush1.msra.mxu0 0.0
        %1042 = vmatprep.subr.mxu0 0.0
        %1043 = vmatpush1.msra.mxu0 0.0
        %1044 = vmatprep.subr.mxu0 0.0
        %1045 = vmatpush1.msra.mxu0 0.0
        %1046 = vmatprep.subr.mxu0 0.0
        %1047 = vmatpush1.msra.mxu0 0.0
        %1048 = vmatprep.subr.mxu0 0.0
        %1049 = vmatpush1.msra.mxu0 0.0
        %1050 = vmatprep.subr.mxu0 0.0
        %1051 = vmatpush1.msra.mxu0 0.0
        %1052 = vmatprep.subr.mxu0 0.0
        %1053 = vmatpush1.msra.mxu0 0.0
        %1054 = vmatprep.subr.mxu0 0.0
        %1055 = vmatpush1.msra.mxu0 0.0
        %1056 = vmatprep.subr.mxu0 0.0
        %1057 = vmatpush1.msra.mxu0 0.0
        %1058 = vmatprep.subr.mxu0 0.0
        %1059 = vmatpush1.msra.mxu0 0.0
        %1060 = vmatprep.subr.mxu0 0.0
        %1061 = vmatpush1.msra.mxu0 0.0
        %1062 = vmatprep.subr.mxu0 0.0
        %1063 = vmatpush1.msra.mxu0 0.0
        %1064 = vmatprep.subr.mxu0 0.0
        %1065 = vmatpush1.msra.mxu0 0.0
        %1066 = vmatprep.subr.mxu0 0.0
        %1067 = vmatpush1.msra.mxu0 0.0
        %1068 = vmatprep.subr.mxu0 0.0
        %1069 = vmatpush1.msra.mxu0 0.0
        %1070 = vmatprep.subr.mxu0 0.0
        %1071 = vmatpush1.msra.mxu0 0.0
        %1072 = vmatprep.subr.mxu0 0.0
        %1073 = vmatpush1.msra.mxu0 0.0
        %1074 = vmatprep.subr.mxu0 0.0
        %1075 = vmatpush1.msra.mxu0 0.0
        %1076 = vmatprep.subr.mxu0 0.0
        %1077 = vmatpush1.msra.mxu0 0.0
        %1078 = vmatprep.subr.mxu0 0.0
        %1079 = vmatpush1.msra.mxu0 0.0
        %1080 = vmatprep.subr.mxu0 0.0
        %1081 = vmatpush1.msra.mxu0 0.0
        %1082 = vmatprep.mubr.f32.mxu0 0.0
        %1083 = vmatmul.mubr.f32.gmra.mrb[0].mxu0 %v995
        %v1084 = vpop.f32.mrb[0].mxu0
        %v1085 = vadd.f32 0.0, %v1084
        %v1086 = vpop.f32.mrb[0].mxu0
        %1087 = vmatprep.mubr.f32.mxu0 0.0
        %1088 = vmatmul.mubr.f32.gmra.mrb[0].mxu0 %v998
        %v1089 = vpop.f32.mrb[0].mxu0
        %v1090 = vadd.f32 0.0, %v1089
        %v1091 = vpop.f32.mrb[0].mxu0
        %1092 = vmatprep.mubr.f32.mxu0 0.0
        %1093 = vmatmul.mubr.f32.gmra.mrb[0].mxu0 %v1001
        %v1094 = vpop.f32.mrb[0].mxu0
        %v1095 = vadd.f32 0.0, %v1094
        %v1096 = vpop.f32.mrb[0].mxu0
        %1097 = vmatprep.mubr.f32.mxu0 0.0
        %1098 = vmatmul.mubr.f32.gmra.mrb[0].mxu0 %v1004
        %v1099 = vpop.f32.mrb[0].mxu0
        %v1100 = vadd.f32 0.0, %v1099
        %v1101 = vpop.f32.mrb[0].mxu0
        %1102 = vmatprep.mubr.f32.mxu0 0.0
        %1103 = vmatmul.mubr.f32.gmra.mrb[0].mxu0 %v1007
        %v1104 = vpop.f32.mrb[0].mxu0
        %v1105 = vadd.f32 0.0, %v1104
        %v1106 = vpop.f32.mrb[0].mxu0
        %1107 = vmatprep.mubr.f32.mxu0 0.0
        %1108 = vmatmul.mubr.f32.gmra.mrb[0].mxu0 %v1010
        %v1109 = vpop.f32.mrb[0].mxu0
        %v1110 = vadd.f32 0.0, %v1109
        %v1111 = vpop.f32.mrb[0].mxu0
        %1112 = vmatprep.mubr.f32.mxu0 0.0
        %1113 = vmatmul.mubr.f32.gmra.mrb[0].mxu0 %v1013
        %v1114 = vpop.f32.mrb[0].mxu0
        %v1115 = vadd.f32 0.0, %v1114
        %v1116 = vpop.f32.mrb[0].mxu0
        %1117 = vmatprep.mubr.f32.mxu0 0.0
        %1118 = vmatmul.mubr.f32.gmra.mrb[0].mxu0 %v1016
        %v1119 = vpop.f32.mrb[0].mxu0
        %v1120 = vadd.f32 0.0, %v1119
        %v1121 = vpop.f32.mrb[0].mxu0
        %1122 = vdwg.mxu0
        %v1124 = vsel %vm952, %v961, 0
        %v1127 = vsel %vm952, %v962, 0
        %v1130 = vsel %vm952, %v963, 0
        %v1133 = vsel %vm952, %v964, 0
        %v1136 = vsel %vm952, %v965, 0
        %v1139 = vsel %vm952, %v966, 0
        %v1142 = vsel %vm952, %v967, 0
        %v1145 = vsel %vm952, %v968, 0
        %1147 = vmatprep.subr.mxu0 0.0
        %1148 = vmatpush1.msra.mxu0 %v985
        %1149 = vmatprep.subr.mxu0 0.0
        %1150 = vmatpush1.msra.mxu0 %v986
        %1151 = vmatprep.subr.mxu0 0.0
        %1152 = vmatpush1.msra.mxu0 %v987
        %1153 = vmatprep.subr.mxu0 0.0
        %1154 = vmatpush1.msra.mxu0 %v988
        %1155 = vmatprep.subr.mxu0 0.0
        %1156 = vmatpush1.msra.mxu0 0.0
        %1157 = vmatprep.subr.mxu0 0.0
        %1158 = vmatpush1.msra.mxu0 0.0
        %1159 = vmatprep.subr.mxu0 0.0
        %1160 = vmatpush1.msra.mxu0 0.0
        %1161 = vmatprep.subr.mxu0 0.0
        %1162 = vmatpush1.msra.mxu0 0.0
        %1163 = vmatprep.subr.mxu0 0.0
        %1164 = vmatpush1.msra.mxu0 0.0
        %1165 = vmatprep.subr.mxu0 0.0
        %1166 = vmatpush1.msra.mxu0 0.0
        %1167 = vmatprep.subr.mxu0 0.0
        %1168 = vmatpush1.msra.mxu0 0.0
        %1169 = vmatprep.subr.mxu0 0.0
        %1170 = vmatpush1.msra.mxu0 0.0
        %1171 = vmatprep.subr.mxu0 0.0
        %1172 = vmatpush1.msra.mxu0 0.0
        %1173 = vmatprep.subr.mxu0 0.0
        %1174 = vmatpush1.msra.mxu0 0.0
        %1175 = vmatprep.subr.mxu0 0.0
        %1176 = vmatpush1.msra.mxu0 0.0
        %1177 = vmatprep.subr.mxu0 0.0
        %1178 = vmatpush1.msra.mxu0 0.0
        %1179 = vmatprep.subr.mxu0 0.0
        %1180 = vmatpush1.msra.mxu0 0.0
        %1181 = vmatprep.subr.mxu0 0.0
        %1182 = vmatpush1.msra.mxu0 0.0
        %1183 = vmatprep.subr.mxu0 0.0
        %1184 = vmatpush1.msra.mxu0 0.0
        %1185 = vmatprep.subr.mxu0 0.0
        %1186 = vmatpush1.msra.mxu0 0.0
        %1187 = vmatprep.subr.mxu0 0.0
        %1188 = vmatpush1.msra.mxu0 0.0
        %1189 = vmatprep.subr.mxu0 0.0
        %1190 = vmatpush1.msra.mxu0 0.0
        %1191 = vmatprep.subr.mxu0 0.0
        %1192 = vmatpush1.msra.mxu0 0.0
        %1193 = vmatprep.subr.mxu0 0.0
        %1194 = vmatpush1.msra.mxu0 0.0
        %1195 = vmatprep.subr.mxu0 0.0
        %1196 = vmatpush1.msra.mxu0 0.0
        %1197 = vmatprep.subr.mxu0 0.0
        %1198 = vmatpush1.msra.mxu0 0.0
        %1199 = vmatprep.subr.mxu0 0.0
        %1200 = vmatpush1.msra.mxu0 0.0
        %1201 = vmatprep.subr.mxu0 0.0
        %1202 = vmatpush1.msra.mxu0 0.0
        %1203 = vmatprep.subr.mxu0 0.0
        %1204 = vmatpush1.msra.mxu0 0.0
        %1205 = vmatprep.subr.mxu0 0.0
        %1206 = vmatpush1.msra.mxu0 0.0
        %1207 = vmatprep.subr.mxu0 0.0
        %1208 = vmatpush1.msra.mxu0 0.0
        %1209 = vmatprep.subr.mxu0 0.0
        %1210 = vmatpush1.msra.mxu0 0.0
        %1211 = vmatprep.mubr.f32.mxu0 0.0
        %1212 = vmatmul.mubr.f32.gmra.mrb[0].mxu0 %v1124
        %v1213 = vpop.f32.mrb[0].mxu0
        %v1214 = vadd.f32 %v1085, %v1213
        %v1215 = vpop.f32.mrb[0].mxu0
        %1216 = vmatprep.mubr.f32.mxu0 0.0
        %1217 = vmatmul.mubr.f32.gmra.mrb[0].mxu0 %v1127
        %v1218 = vpop.f32.mrb[0].mxu0
        %v1219 = vadd.f32 %v1090, %v1218
        %v1220 = vpop.f32.mrb[0].mxu0
        %1221 = vmatprep.mubr.f32.mxu0 0.0
        %1222 = vmatmul.mubr.f32.gmra.mrb[0].mxu0 %v1130
        %v1223 = vpop.f32.mrb[0].mxu0
        %v1224 = vadd.f32 %v1095, %v1223
        %v1225 = vpop.f32.mrb[0].mxu0
        %1226 = vmatprep.mubr.f32.mxu0 0.0
        %1227 = vmatmul.mubr.f32.gmra.mrb[0].mxu0 %v1133
        %v1228 = vpop.f32.mrb[0].mxu0
        %v1229 = vadd.f32 %v1100, %v1228
        %v1230 = vpop.f32.mrb[0].mxu0
        %1231 = vmatprep.mubr.f32.mxu0 0.0
        %1232 = vmatmul.mubr.f32.gmra.mrb[0].mxu0 %v1136
        %v1233 = vpop.f32.mrb[0].mxu0
        %v1234 = vadd.f32 %v1105, %v1233
        %v1235 = vpop.f32.mrb[0].mxu0
        %1236 = vmatprep.mubr.f32.mxu0 0.0
        %1237 = vmatmul.mubr.f32.gmra.mrb[0].mxu0 %v1139
        %v1238 = vpop.f32.mrb[0].mxu0
        %v1239 = vadd.f32 %v1110, %v1238
        %v1240 = vpop.f32.mrb[0].mxu0
        %1241 = vmatprep.mubr.f32.mxu0 0.0
        %1242 = vmatmul.mubr.f32.gmra.mrb[0].mxu0 %v1142
        %v1243 = vpop.f32.mrb[0].mxu0
        %v1244 = vadd.f32 %v1115, %v1243
        %v1245 = vpop.f32.mrb[0].mxu0
        %1246 = vmatprep.mubr.f32.mxu0 0.0
        %1247 = vmatmul.mubr.f32.gmra.mrb[0].mxu0 %v1145
        %v1248 = vpop.f32.mrb[0].mxu0
        %v1249 = vadd.f32 %v1120, %v1248
        %v1250 = vpop.f32.mrb[0].mxu0
        %1251 = vdwg.mxu0
        %s1252 = scalar_lea.vmem %s4, 64
        %v1253 = vld [vmem:[%s1252] sm:$0xff]
        %v1254 = vld [vmem:[%s1252 + $0x8] sm:$0xff]
        %v1255 = vld [vmem:[%s1252 + $0x10] sm:$0xff]
        %v1256 = vld [vmem:[%s1252 + $0x18] sm:$0xff]
        %v1258 = vsel %vm952, %v977, 0
        %v1261 = vsel %vm952, %v978, 0
        %v1264 = vsel %vm952, %v979, 0
        %v1267 = vsel %vm952, %v980, 0
        %v1270 = vsel %vm952, %v981, 0
        %v1273 = vsel %vm952, %v982, 0
        %v1276 = vsel %vm952, %v983, 0
        %v1279 = vsel %vm952, %v984, 0
        %1281 = vmatprep.subr.mxu0 0.0
        %1282 = vmatpush1.msra.mxu0 %v1253
        %1283 = vmatprep.subr.mxu0 0.0
        %1284 = vmatpush1.msra.mxu0 %v1254
        %1285 = vmatprep.subr.mxu0 0.0
        %1286 = vmatpush1.msra.mxu0 %v1255
        %1287 = vmatprep.subr.mxu0 0.0
        %1288 = vmatpush1.msra.mxu0 %v1256
        %1289 = vmatprep.subr.mxu0 0.0
        %1290 = vmatpush1.msra.mxu0 0.0
        %1291 = vmatprep.subr.mxu0 0.0
        %1292 = vmatpush1.msra.mxu0 0.0
        %1293 = vmatprep.subr.mxu0 0.0
        %1294 = vmatpush1.msra.mxu0 0.0
        %1295 = vmatprep.subr.mxu0 0.0
        %1296 = vmatpush1.msra.mxu0 0.0
        %1297 = vmatprep.subr.mxu0 0.0
        %1298 = vmatpush1.msra.mxu0 0.0
        %1299 = vmatprep.subr.mxu0 0.0
        %1300 = vmatpush1.msra.mxu0 0.0
        %1301 = vmatprep.subr.mxu0 0.0
        %1302 = vmatpush1.msra.mxu0 0.0
        %1303 = vmatprep.subr.mxu0 0.0
        %1304 = vmatpush1.msra.mxu0 0.0
        %1305 = vmatprep.subr.mxu0 0.0
        %1306 = vmatpush1.msra.mxu0 0.0
        %1307 = vmatprep.subr.mxu0 0.0
        %1308 = vmatpush1.msra.mxu0 0.0
        %1309 = vmatprep.subr.mxu0 0.0
        %1310 = vmatpush1.msra.mxu0 0.0
        %1311 = vmatprep.subr.mxu0 0.0
        %1312 = vmatpush1.msra.mxu0 0.0
        %1313 = vmatprep.subr.mxu0 0.0
        %1314 = vmatpush1.msra.mxu0 0.0
        %1315 = vmatprep.subr.mxu0 0.0
        %1316 = vmatpush1.msra.mxu0 0.0
        %1317 = vmatprep.subr.mxu0 0.0
        %1318 = vmatpush1.msra.mxu0 0.0
        %1319 = vmatprep.subr.mxu0 0.0
        %1320 = vmatpush1.msra.mxu0 0.0
        %1321 = vmatprep.subr.mxu0 0.0
        %1322 = vmatpush1.msra.mxu0 0.0
        %1323 = vmatprep.subr.mxu0 0.0
        %1324 = vmatpush1.msra.mxu0 0.0
        %1325 = vmatprep.subr.mxu0 0.0
        %1326 = vmatpush1.msra.mxu0 0.0
        %1327 = vmatprep.subr.mxu0 0.0
        %1328 = vmatpush1.msra.mxu0 0.0
        %1329 = vmatprep.subr.mxu0 0.0
        %1330 = vmatpush1.msra.mxu0 0.0
        %1331 = vmatprep.subr.mxu0 0.0
        %1332 = vmatpush1.msra.mxu0 0.0
        %1333 = vmatprep.subr.mxu0 0.0
        %1334 = vmatpush1.msra.mxu0 0.0
        %1335 = vmatprep.subr.mxu0 0.0
        %1336 = vmatpush1.msra.mxu0 0.0
        %1337 = vmatprep.subr.mxu0 0.0
        %1338 = vmatpush1.msra.mxu0 0.0
        %1339 = vmatprep.subr.mxu0 0.0
        %1340 = vmatpush1.msra.mxu0 0.0
        %1341 = vmatprep.subr.mxu0 0.0
        %1342 = vmatpush1.msra.mxu0 0.0
        %1343 = vmatprep.subr.mxu0 0.0
        %1344 = vmatpush1.msra.mxu0 0.0
        %1345 = vmatprep.mubr.f32.mxu0 0.0
        %1346 = vmatmul.mubr.f32.gmra.mrb[0].mxu0 %v1258
        %v1347 = vpop.f32.mrb[0].mxu0
        %v1348 = vadd.f32 0.0, %v1347
        %v1349 = vpop.f32.mrb[0].mxu0
        %1350 = vmatprep.mubr.f32.mxu0 0.0
        %1351 = vmatmul.mubr.f32.gmra.mrb[0].mxu0 %v1261
        %v1352 = vpop.f32.mrb[0].mxu0
        %v1353 = vadd.f32 0.0, %v1352
        %v1354 = vpop.f32.mrb[0].mxu0
        %1355 = vmatprep.mubr.f32.mxu0 0.0
        %1356 = vmatmul.mubr.f32.gmra.mrb[0].mxu0 %v1264
        %v1357 = vpop.f32.mrb[0].mxu0
        %v1358 = vadd.f32 0.0, %v1357
        %v1359 = vpop.f32.mrb[0].mxu0
        %1360 = vmatprep.mubr.f32.mxu0 0.0
        %1361 = vmatmul.mubr.f32.gmra.mrb[0].mxu0 %v1267
        %v1362 = vpop.f32.mrb[0].mxu0
        %v1363 = vadd.f32 0.0, %v1362
        %v1364 = vpop.f32.mrb[0].mxu0
        %1365 = vmatprep.mubr.f32.mxu0 0.0
        %1366 = vmatmul.mubr.f32.gmra.mrb[0].mxu0 %v1270
        %v1367 = vpop.f32.mrb[0].mxu0
        %v1368 = vadd.f32 0.0, %v1367
        %v1369 = vpop.f32.mrb[0].mxu0
        %1370 = vmatprep.mubr.f32.mxu0 0.0
        %1371 = vmatmul.mubr.f32.gmra.mrb[0].mxu0 %v1273
        %v1372 = vpop.f32.mrb[0].mxu0
        %v1373 = vadd.f32 0.0, %v1372
        %v1374 = vpop.f32.mrb[0].mxu0
        %1375 = vmatprep.mubr.f32.mxu0 0.0
        %1376 = vmatmul.mubr.f32.gmra.mrb[0].mxu0 %v1276
        %v1377 = vpop.f32.mrb[0].mxu0
        %v1378 = vadd.f32 0.0, %v1377
        %v1379 = vpop.f32.mrb[0].mxu0
        %1380 = vmatprep.mubr.f32.mxu0 0.0
        %1381 = vmatmul.mubr.f32.gmra.mrb[0].mxu0 %v1279
        %v1382 = vpop.f32.mrb[0].mxu0
        %v1383 = vadd.f32 0.0, %v1382
        %v1384 = vpop.f32.mrb[0].mxu0
        %1385 = vdwg.mxu0
        %v1386 = vadd.f32 %v1214, %v1348
        %v1387 = vadd.f32 %v1219, %v1353
        %v1388 = vadd.f32 %v1224, %v1358
        %v1389 = vadd.f32 %v1229, %v1363
        %v1390 = vadd.f32 %v1234, %v1368
        %v1391 = vadd.f32 %v1239, %v1373
        %v1392 = vadd.f32 %v1244, %v1378
        %v1393 = vadd.f32 %v1249, %v1383
        %v1394 = vld [vmem:[%s5] sm:$0x1]
        %v1396 = vlaneseq
        %v1397 = vshrl.u32 %v1396, 7
        %v1398 = vsub.s32 0, %v1397
        %v1399 = vrot.slane %v1394, %v1398
        %v1401 = vmul.f32 %v1386, %v1399
        %v1402 = vmul.f32 %v1387, %v1399
        %v1403 = vmul.f32 %v1388, %v1399
        %v1404 = vmul.f32 %v1389, %v1399
        %v1405 = vmul.f32 %v1390, %v1399
        %v1406 = vmul.f32 %v1391, %v1399
        %v1407 = vmul.f32 %v1392, %v1399
        %v1408 = vmul.f32 %v1393, %v1399
        %v1409 = vld [vmem:[%s6] sm:$0x1]
        %v1411 = vlaneseq
        %v1412 = vshrl.u32 %v1411, 7
        %v1413 = vsub.s32 0, %v1412
        %v1414 = vrot.slane %v1409, %v1413
        %v1416 = vadd.f32 %v1401, %v1414
        %v1417 = vadd.f32 %v1402, %v1414
        %v1418 = vadd.f32 %v1403, %v1414
        %v1419 = vadd.f32 %v1404, %v1414
        %v1420 = vadd.f32 %v1405, %v1414
        %v1421 = vadd.f32 %v1406, %v1414
        %v1422 = vadd.f32 %v1407, %v1414
        %v1423 = vadd.f32 %v1408, %v1414
        %v1424 = vmax.f32 %v1416, 0.0
        %v1425 = vmax.f32 %v1417, 0.0
        %v1426 = vmax.f32 %v1418, 0.0
        %v1427 = vmax.f32 %v1419, 0.0
        %v1428 = vmax.f32 %v1420, 0.0
        %v1429 = vmax.f32 %v1421, 0.0
        %v1430 = vmax.f32 %v1422, 0.0
        %v1431 = vmax.f32 %v1423, 0.0
        %v1432 = vld [vmem:[#allocation4] sm:$0xff]
        %v1433 = vld [vmem:[#allocation4 + $0x8] sm:$0xff]
        %v1434 = vld [vmem:[#allocation4 + $0x10] sm:$0xff]
        %v1435 = vld [vmem:[#allocation4 + $0x18] sm:$0xff]
        %s1436 = scalar_lea.vmem [#allocation4], 32
        %v1437 = vld [vmem:[%s1436] sm:$0xff]
        %v1438 = vld [vmem:[%s1436 + $0x8] sm:$0xff]
        %v1439 = vld [vmem:[%s1436 + $0x10] sm:$0xff]
        %v1440 = vld [vmem:[%s1436 + $0x18] sm:$0xff]
        %v1449 = vrot.slane %v1424, 1
        %vm1450 = vcmask 1041409
        %v1451 = vsel %vm1450, %v1425, %v1449
        %v1452 = vrot.slane %v1426, 7
        %vm1453 = vcmask 1042434
        %v1454 = vsel %vm1453, %v1452, %v1451
        %v1455 = vrot.slane %v1427, 6
        %vm1456 = vcmask 1043459
        %v1457 = vsel %vm1456, %v1455, %v1454
        %v1458 = vrot.slane %v1428, 5
        %vm1459 = vcmask 1044484
        %v1460 = vsel %vm1459, %v1458, %v1457
        %v1461 = vrot.slane %v1429, 4
        %vm1462 = vcmask 1045509
        %v1463 = vsel %vm1462, %v1461, %v1460
        %v1464 = vrot.slane %v1430, 3
        %vm1465 = vcmask 1046534
        %v1466 = vsel %vm1465, %v1464, %v1463
        %v1467 = vrot.slane %v1431, 2
        %vm1468 = vcmask 1047559
        %v1469 = vsel %vm1468, %v1467, %v1466
        %v1470 = vsel %vm952, %v1469, 0
        %1472 = vmatprep.subr.mxu0 0.0
        %1473 = vmatpush1.msra.mxu0 %v1437
        %1474 = vmatprep.subr.mxu0 0.0
        %1475 = vmatpush1.msra.mxu0 %v1438
        %1476 = vmatprep.subr.mxu0 0.0
        %1477 = vmatpush1.msra.mxu0 %v1439
        %1478 = vmatprep.subr.mxu0 0.0
        %1479 = vmatpush1.msra.mxu0 %v1440
        %1480 = vmatprep.subr.mxu0 0.0
        %1481 = vmatpush1.msra.mxu0 0.0
        %1482 = vmatprep.subr.mxu0 0.0
        %1483 = vmatpush1.msra.mxu0 0.0
        %1484 = vmatprep.subr.mxu0 0.0
        %1485 = vmatpush1.msra.mxu0 0.0
        %1486 = vmatprep.subr.mxu0 0.0
        %1487 = vmatpush1.msra.mxu0 0.0
        %1488 = vmatprep.subr.mxu0 0.0
        %1489 = vmatpush1.msra.mxu0 0.0
        %1490 = vmatprep.subr.mxu0 0.0
        %1491 = vmatpush1.msra.mxu0 0.0
        %1492 = vmatprep.subr.mxu0 0.0
        %1493 = vmatpush1.msra.mxu0 0.0
        %1494 = vmatprep.subr.mxu0 0.0
        %1495 = vmatpush1.msra.mxu0 0.0
        %1496 = vmatprep.subr.mxu0 0.0
        %1497 = vmatpush1.msra.mxu0 0.0
        %1498 = vmatprep.subr.mxu0 0.0
        %1499 = vmatpush1.msra.mxu0 0.0
        %1500 = vmatprep.subr.mxu0 0.0
        %1501 = vmatpush1.msra.mxu0 0.0
        %1502 = vmatprep.subr.mxu0 0.0
        %1503 = vmatpush1.msra.mxu0 0.0
        %1504 = vmatprep.subr.mxu0 0.0
        %1505 = vmatpush1.msra.mxu0 0.0
        %1506 = vmatprep.subr.mxu0 0.0
        %1507 = vmatpush1.msra.mxu0 0.0
        %1508 = vmatprep.subr.mxu0 0.0
        %1509 = vmatpush1.msra.mxu0 0.0
        %1510 = vmatprep.subr.mxu0 0.0
        %1511 = vmatpush1.msra.mxu0 0.0
        %1512 = vmatprep.subr.mxu0 0.0
        %1513 = vmatpush1.msra.mxu0 0.0
        %1514 = vmatprep.subr.mxu0 0.0
        %1515 = vmatpush1.msra.mxu0 0.0
        %1516 = vmatprep.subr.mxu0 0.0
        %1517 = vmatpush1.msra.mxu0 0.0
        %1518 = vmatprep.subr.mxu0 0.0
        %1519 = vmatpush1.msra.mxu0 0.0
        %1520 = vmatprep.subr.mxu0 0.0
        %1521 = vmatpush1.msra.mxu0 0.0
        %1522 = vmatprep.subr.mxu0 0.0
        %1523 = vmatpush1.msra.mxu0 0.0
        %1524 = vmatprep.subr.mxu0 0.0
        %1525 = vmatpush1.msra.mxu0 0.0
        %1526 = vmatprep.subr.mxu0 0.0
        %1527 = vmatpush1.msra.mxu0 0.0
        %1528 = vmatprep.subr.mxu0 0.0
        %1529 = vmatpush1.msra.mxu0 0.0
        %1530 = vmatprep.subr.mxu0 0.0
        %1531 = vmatpush1.msra.mxu0 0.0
        %1532 = vmatprep.subr.mxu0 0.0
        %1533 = vmatpush1.msra.mxu0 0.0
        %1534 = vmatprep.subr.mxu0 0.0
        %1535 = vmatpush1.msra.mxu0 0.0
        %1536 = vmatprep.mubr.f32.mxu0 0.0
        %1537 = vmatmul.mubr.f32.gmra.mrb[0].mxu0 %v1470
        %v1538 = vpop.f32.mrb[0].mxu0
        %v1539 = vadd.f32 0.0, %v1538
        %v1540 = vpop.f32.mrb[0].mxu0
        %1541 = vdwg.mxu0
        %v1542 = vrot.slane %v1425, 7
        %v1543 = vsel %vm1450, %v1542, %v1424
        %v1544 = vrot.slane %v1426, 6
        %v1545 = vsel %vm1453, %v1544, %v1543
        %v1546 = vrot.slane %v1427, 5
        %v1547 = vsel %vm1456, %v1546, %v1545
        %v1548 = vrot.slane %v1428, 4
        %v1549 = vsel %vm1459, %v1548, %v1547
        %v1550 = vrot.slane %v1429, 3
        %v1551 = vsel %vm1462, %v1550, %v1549
        %v1552 = vrot.slane %v1430, 2
        %v1553 = vsel %vm1465, %v1552, %v1551
        %v1554 = vrot.slane %v1431, 1
        %v1555 = vsel %vm1468, %v1554, %v1553
        %v1556 = vsel %vm952, %v1555, 0
        %1558 = vmatprep.subr.mxu0 0.0
        %1559 = vmatpush1.msra.mxu0 %v1432
        %1560 = vmatprep.subr.mxu0 0.0
        %1561 = vmatpush1.msra.mxu0 %v1433
        %1562 = vmatprep.subr.mxu0 0.0
        %1563 = vmatpush1.msra.mxu0 %v1434
        %1564 = vmatprep.subr.mxu0 0.0
        %1565 = vmatpush1.msra.mxu0 %v1435
        %1566 = vmatprep.subr.mxu0 0.0
        %1567 = vmatpush1.msra.mxu0 0.0
        %1568 = vmatprep.subr.mxu0 0.0
        %1569 = vmatpush1.msra.mxu0 0.0
        %1570 = vmatprep.subr.mxu0 0.0
        %1571 = vmatpush1.msra.mxu0 0.0
        %1572 = vmatprep.subr.mxu0 0.0
        %1573 = vmatpush1.msra.mxu0 0.0
        %1574 = vmatprep.subr.mxu0 0.0
        %1575 = vmatpush1.msra.mxu0 0.0
        %1576 = vmatprep.subr.mxu0 0.0
        %1577 = vmatpush1.msra.mxu0 0.0
        %1578 = vmatprep.subr.mxu0 0.0
        %1579 = vmatpush1.msra.mxu0 0.0
        %1580 = vmatprep.subr.mxu0 0.0
        %1581 = vmatpush1.msra.mxu0 0.0
        %1582 = vmatprep.subr.mxu0 0.0
        %1583 = vmatpush1.msra.mxu0 0.0
        %1584 = vmatprep.subr.mxu0 0.0
        %1585 = vmatpush1.msra.mxu0 0.0
        %1586 = vmatprep.subr.mxu0 0.0
        %1587 = vmatpush1.msra.mxu0 0.0
        %1588 = vmatprep.subr.mxu0 0.0
        %1589 = vmatpush1.msra.mxu0 0.0
        %1590 = vmatprep.subr.mxu0 0.0
        %1591 = vmatpush1.msra.mxu0 0.0
        %1592 = vmatprep.subr.mxu0 0.0
        %1593 = vmatpush1.msra.mxu0 0.0
        %1594 = vmatprep.subr.mxu0 0.0
        %1595 = vmatpush1.msra.mxu0 0.0
        %1596 = vmatprep.subr.mxu0 0.0
        %1597 = vmatpush1.msra.mxu0 0.0
        %1598 = vmatprep.subr.mxu0 0.0
        %1599 = vmatpush1.msra.mxu0 0.0
        %1600 = vmatprep.subr.mxu0 0.0
        %1601 = vmatpush1.msra.mxu0 0.0
        %1602 = vmatprep.subr.mxu0 0.0
        %1603 = vmatpush1.msra.mxu0 0.0
        %1604 = vmatprep.subr.mxu0 0.0
        %1605 = vmatpush1.msra.mxu0 0.0
        %1606 = vmatprep.subr.mxu0 0.0
        %1607 = vmatpush1.msra.mxu0 0.0
        %1608 = vmatprep.subr.mxu0 0.0
        %1609 = vmatpush1.msra.mxu0 0.0
        %1610 = vmatprep.subr.mxu0 0.0
        %1611 = vmatpush1.msra.mxu0 0.0
        %1612 = vmatprep.subr.mxu0 0.0
        %1613 = vmatpush1.msra.mxu0 0.0
        %1614 = vmatprep.subr.mxu0 0.0
        %1615 = vmatpush1.msra.mxu0 0.0
        %1616 = vmatprep.subr.mxu0 0.0
        %1617 = vmatpush1.msra.mxu0 0.0
        %1618 = vmatprep.subr.mxu0 0.0
        %1619 = vmatpush1.msra.mxu0 0.0
        %1620 = vmatprep.subr.mxu0 0.0
        %1621 = vmatpush1.msra.mxu0 0.0
        %1622 = vmatprep.mubr.f32.mxu0 0.0
        %1623 = vmatmul.mubr.f32.gmra.mrb[0].mxu0 %v1556
        %v1624 = vpop.f32.mrb[0].mxu0
        %v1625 = vadd.f32 %v1539, %v1624
        %v1626 = vpop.f32.mrb[0].mxu0
        %1627 = vdwg.mxu0
        %s1628 = scalar_lea.vmem [#allocation4], 64
        %v1629 = vld [vmem:[%s1628] sm:$0xff]
        %v1630 = vld [vmem:[%s1628 + $0x8] sm:$0xff]
        %v1631 = vld [vmem:[%s1628 + $0x10] sm:$0xff]
        %v1632 = vld [vmem:[%s1628 + $0x18] sm:$0xff]
        %v1633 = vrot.slane %v1424, 2
        %v1634 = vrot.slane %v1425, 1
        %v1635 = vsel %vm1450, %v1634, %v1633
        %v1636 = vsel %vm1453, %v1426, %v1635
        %v1637 = vrot.slane %v1427, 7
        %v1638 = vsel %vm1456, %v1637, %v1636
        %v1639 = vrot.slane %v1428, 6
        %v1640 = vsel %vm1459, %v1639, %v1638
        %v1641 = vrot.slane %v1429, 5
        %v1642 = vsel %vm1462, %v1641, %v1640
        %v1643 = vrot.slane %v1430, 4
        %v1644 = vsel %vm1465, %v1643, %v1642
        %v1645 = vrot.slane %v1431, 3
        %v1646 = vsel %vm1468, %v1645, %v1644
        %v1647 = vsel %vm952, %v1646, 0
        %1649 = vmatprep.subr.mxu0 0.0
        %1650 = vmatpush1.msra.mxu0 %v1629
        %1651 = vmatprep.subr.mxu0 0.0
        %1652 = vmatpush1.msra.mxu0 %v1630
        %1653 = vmatprep.subr.mxu0 0.0
        %1654 = vmatpush1.msra.mxu0 %v1631
        %1655 = vmatprep.subr.mxu0 0.0
        %1656 = vmatpush1.msra.mxu0 %v1632
        %1657 = vmatprep.subr.mxu0 0.0
        %1658 = vmatpush1.msra.mxu0 0.0
        %1659 = vmatprep.subr.mxu0 0.0
        %1660 = vmatpush1.msra.mxu0 0.0
        %1661 = vmatprep.subr.mxu0 0.0
        %1662 = vmatpush1.msra.mxu0 0.0
        %1663 = vmatprep.subr.mxu0 0.0
        %1664 = vmatpush1.msra.mxu0 0.0
        %1665 = vmatprep.subr.mxu0 0.0
        %1666 = vmatpush1.msra.mxu0 0.0
        %1667 = vmatprep.subr.mxu0 0.0
        %1668 = vmatpush1.msra.mxu0 0.0
        %1669 = vmatprep.subr.mxu0 0.0
        %1670 = vmatpush1.msra.mxu0 0.0
        %1671 = vmatprep.subr.mxu0 0.0
        %1672 = vmatpush1.msra.mxu0 0.0
        %1673 = vmatprep.subr.mxu0 0.0
        %1674 = vmatpush1.msra.mxu0 0.0
        %1675 = vmatprep.subr.mxu0 0.0
        %1676 = vmatpush1.msra.mxu0 0.0
        %1677 = vmatprep.subr.mxu0 0.0
        %1678 = vmatpush1.msra.mxu0 0.0
        %1679 = vmatprep.subr.mxu0 0.0
        %1680 = vmatpush1.msra.mxu0 0.0
        %1681 = vmatprep.subr.mxu0 0.0
        %1682 = vmatpush1.msra.mxu0 0.0
        %1683 = vmatprep.subr.mxu0 0.0
        %1684 = vmatpush1.msra.mxu0 0.0
        %1685 = vmatprep.subr.mxu0 0.0
        %1686 = vmatpush1.msra.mxu0 0.0
        %1687 = vmatprep.subr.mxu0 0.0
        %1688 = vmatpush1.msra.mxu0 0.0
        %1689 = vmatprep.subr.mxu0 0.0
        %1690 = vmatpush1.msra.mxu0 0.0
        %1691 = vmatprep.subr.mxu0 0.0
        %1692 = vmatpush1.msra.mxu0 0.0
        %1693 = vmatprep.subr.mxu0 0.0
        %1694 = vmatpush1.msra.mxu0 0.0
        %1695 = vmatprep.subr.mxu0 0.0
        %1696 = vmatpush1.msra.mxu0 0.0
        %1697 = vmatprep.subr.mxu0 0.0
        %1698 = vmatpush1.msra.mxu0 0.0
        %1699 = vmatprep.subr.mxu0 0.0
        %1700 = vmatpush1.msra.mxu0 0.0
        %1701 = vmatprep.subr.mxu0 0.0
        %1702 = vmatpush1.msra.mxu0 0.0
        %1703 = vmatprep.subr.mxu0 0.0
        %1704 = vmatpush1.msra.mxu0 0.0
        %1705 = vmatprep.subr.mxu0 0.0
        %1706 = vmatpush1.msra.mxu0 0.0
        %1707 = vmatprep.subr.mxu0 0.0
        %1708 = vmatpush1.msra.mxu0 0.0
        %1709 = vmatprep.subr.mxu0 0.0
        %1710 = vmatpush1.msra.mxu0 0.0
        %1711 = vmatprep.subr.mxu0 0.0
        %1712 = vmatpush1.msra.mxu0 0.0
        %1713 = vmatprep.mubr.f32.mxu0 0.0
        %1714 = vmatmul.mubr.f32.gmra.mrb[0].mxu0 %v1647
        %v1715 = vpop.f32.mrb[0].mxu0
        %v1716 = vadd.f32 0.0, %v1715
        %v1717 = vpop.f32.mrb[0].mxu0
        %1718 = vdwg.mxu0
        %v1719 = vadd.f32 %v1625, %v1716
        %s1720 = scalar_lea.vmem [#allocation4], 96
        %v1721 = vld [vmem:[%s1720] sm:$0xff]
        %v1722 = vld [vmem:[%s1720 + $0x8] sm:$0xff]
        %v1723 = vld [vmem:[%s1720 + $0x10] sm:$0xff]
        %v1724 = vld [vmem:[%s1720 + $0x18] sm:$0xff]
        %v1725 = vrot.slane %v1424, 3
        %v1726 = vrot.slane %v1425, 2
        %v1727 = vsel %vm1450, %v1726, %v1725
        %v1728 = vrot.slane %v1426, 1
        %v1729 = vsel %vm1453, %v1728, %v1727
        %v1730 = vsel %vm1456, %v1427, %v1729
        %v1731 = vrot.slane %v1428, 7
        %v1732 = vsel %vm1459, %v1731, %v1730
        %v1733 = vrot.slane %v1429, 6
        %v1734 = vsel %vm1462, %v1733, %v1732
        %v1735 = vrot.slane %v1430, 5
        %v1736 = vsel %vm1465, %v1735, %v1734
        %v1737 = vrot.slane %v1431, 4
        %v1738 = vsel %vm1468, %v1737, %v1736
        %v1739 = vsel %vm952, %v1738, 0
        %1741 = vmatprep.subr.mxu0 0.0
        %1742 = vmatpush1.msra.mxu0 %v1721
        %1743 = vmatprep.subr.mxu0 0.0
        %1744 = vmatpush1.msra.mxu0 %v1722
        %1745 = vmatprep.subr.mxu0 0.0
        %1746 = vmatpush1.msra.mxu0 %v1723
        %1747 = vmatprep.subr.mxu0 0.0
        %1748 = vmatpush1.msra.mxu0 %v1724
        %1749 = vmatprep.subr.mxu0 0.0
        %1750 = vmatpush1.msra.mxu0 0.0
        %1751 = vmatprep.subr.mxu0 0.0
        %1752 = vmatpush1.msra.mxu0 0.0
        %1753 = vmatprep.subr.mxu0 0.0
        %1754 = vmatpush1.msra.mxu0 0.0
        %1755 = vmatprep.subr.mxu0 0.0
        %1756 = vmatpush1.msra.mxu0 0.0
        %1757 = vmatprep.subr.mxu0 0.0
        %1758 = vmatpush1.msra.mxu0 0.0
        %1759 = vmatprep.subr.mxu0 0.0
        %1760 = vmatpush1.msra.mxu0 0.0
        %1761 = vmatprep.subr.mxu0 0.0
        %1762 = vmatpush1.msra.mxu0 0.0
        %1763 = vmatprep.subr.mxu0 0.0
        %1764 = vmatpush1.msra.mxu0 0.0
        %1765 = vmatprep.subr.mxu0 0.0
        %1766 = vmatpush1.msra.mxu0 0.0
        %1767 = vmatprep.subr.mxu0 0.0
        %1768 = vmatpush1.msra.mxu0 0.0
        %1769 = vmatprep.subr.mxu0 0.0
        %1770 = vmatpush1.msra.mxu0 0.0
        %1771 = vmatprep.subr.mxu0 0.0
        %1772 = vmatpush1.msra.mxu0 0.0
        %1773 = vmatprep.subr.mxu0 0.0
        %1774 = vmatpush1.msra.mxu0 0.0
        %1775 = vmatprep.subr.mxu0 0.0
        %1776 = vmatpush1.msra.mxu0 0.0
        %1777 = vmatprep.subr.mxu0 0.0
        %1778 = vmatpush1.msra.mxu0 0.0
        %1779 = vmatprep.subr.mxu0 0.0
        %1780 = vmatpush1.msra.mxu0 0.0
        %1781 = vmatprep.subr.mxu0 0.0
        %1782 = vmatpush1.msra.mxu0 0.0
        %1783 = vmatprep.subr.mxu0 0.0
        %1784 = vmatpush1.msra.mxu0 0.0
        %1785 = vmatprep.subr.mxu0 0.0
        %1786 = vmatpush1.msra.mxu0 0.0
        %1787 = vmatprep.subr.mxu0 0.0
        %1788 = vmatpush1.msra.mxu0 0.0
        %1789 = vmatprep.subr.mxu0 0.0
        %1790 = vmatpush1.msra.mxu0 0.0
        %1791 = vmatprep.subr.mxu0 0.0
        %1792 = vmatpush1.msra.mxu0 0.0
        %1793 = vmatprep.subr.mxu0 0.0
        %1794 = vmatpush1.msra.mxu0 0.0
        %1795 = vmatprep.subr.mxu0 0.0
        %1796 = vmatpush1.msra.mxu0 0.0
        %1797 = vmatprep.subr.mxu0 0.0
        %1798 = vmatpush1.msra.mxu0 0.0
        %1799 = vmatprep.subr.mxu0 0.0
        %1800 = vmatpush1.msra.mxu0 0.0
        %1801 = vmatprep.subr.mxu0 0.0
        %1802 = vmatpush1.msra.mxu0 0.0
        %1803 = vmatprep.subr.mxu0 0.0
        %1804 = vmatpush1.msra.mxu0 0.0
        %1805 = vmatprep.mubr.f32.mxu0 0.0
        %1806 = vmatmul.mubr.f32.gmra.mrb[0].mxu0 %v1739
        %v1807 = vpop.f32.mrb[0].mxu0
        %v1808 = vadd.f32 0.0, %v1807
        %v1809 = vpop.f32.mrb[0].mxu0
        %1810 = vdwg.mxu0
        %v1811 = vadd.f32 %v1719, %v1808
        %s1812 = scalar_lea.vmem [#allocation4], 128
        %v1813 = vld [vmem:[%s1812] sm:$0xff]
        %v1814 = vld [vmem:[%s1812 + $0x8] sm:$0xff]
        %v1815 = vld [vmem:[%s1812 + $0x10] sm:$0xff]
        %v1816 = vld [vmem:[%s1812 + $0x18] sm:$0xff]
        %v1817 = vrot.slane %v1424, 4
        %v1818 = vrot.slane %v1425, 3
        %v1819 = vsel %vm1450, %v1818, %v1817
        %v1820 = vrot.slane %v1426, 2
        %v1821 = vsel %vm1453, %v1820, %v1819
        %v1822 = vrot.slane %v1427, 1
        %v1823 = vsel %vm1456, %v1822, %v1821
        %v1824 = vsel %vm1459, %v1428, %v1823
        %v1825 = vrot.slane %v1429, 7
        %v1826 = vsel %vm1462, %v1825, %v1824
        %v1827 = vrot.slane %v1430, 6
        %v1828 = vsel %vm1465, %v1827, %v1826
        %v1829 = vrot.slane %v1431, 5
        %v1830 = vsel %vm1468, %v1829, %v1828
        %v1831 = vsel %vm952, %v1830, 0
        %1833 = vmatprep.subr.mxu0 0.0
        %1834 = vmatpush1.msra.mxu0 %v1813
        %1835 = vmatprep.subr.mxu0 0.0
        %1836 = vmatpush1.msra.mxu0 %v1814
        %1837 = vmatprep.subr.mxu0 0.0
        %1838 = vmatpush1.msra.mxu0 %v1815
        %1839 = vmatprep.subr.mxu0 0.0
        %1840 = vmatpush1.msra.mxu0 %v1816
        %1841 = vmatprep.subr.mxu0 0.0
        %1842 = vmatpush1.msra.mxu0 0.0
        %1843 = vmatprep.subr.mxu0 0.0
        %1844 = vmatpush1.msra.mxu0 0.0
        %1845 = vmatprep.subr.mxu0 0.0
        %1846 = vmatpush1.msra.mxu0 0.0
        %1847 = vmatprep.subr.mxu0 0.0
        %1848 = vmatpush1.msra.mxu0 0.0
        %1849 = vmatprep.subr.mxu0 0.0
        %1850 = vmatpush1.msra.mxu0 0.0
        %1851 = vmatprep.subr.mxu0 0.0
        %1852 = vmatpush1.msra.mxu0 0.0
        %1853 = vmatprep.subr.mxu0 0.0
        %1854 = vmatpush1.msra.mxu0 0.0
        %1855 = vmatprep.subr.mxu0 0.0
        %1856 = vmatpush1.msra.mxu0 0.0
        %1857 = vmatprep.subr.mxu0 0.0
        %1858 = vmatpush1.msra.mxu0 0.0
        %1859 = vmatprep.subr.mxu0 0.0
        %1860 = vmatpush1.msra.mxu0 0.0
        %1861 = vmatprep.subr.mxu0 0.0
        %1862 = vmatpush1.msra.mxu0 0.0
        %1863 = vmatprep.subr.mxu0 0.0
        %1864 = vmatpush1.msra.mxu0 0.0
        %1865 = vmatprep.subr.mxu0 0.0
        %1866 = vmatpush1.msra.mxu0 0.0
        %1867 = vmatprep.subr.mxu0 0.0
        %1868 = vmatpush1.msra.mxu0 0.0
        %1869 = vmatprep.subr.mxu0 0.0
        %1870 = vmatpush1.msra.mxu0 0.0
        %1871 = vmatprep.subr.mxu0 0.0
        %1872 = vmatpush1.msra.mxu0 0.0
        %1873 = vmatprep.subr.mxu0 0.0
        %1874 = vmatpush1.msra.mxu0 0.0
        %1875 = vmatprep.subr.mxu0 0.0
        %1876 = vmatpush1.msra.mxu0 0.0
        %1877 = vmatprep.subr.mxu0 0.0
        %1878 = vmatpush1.msra.mxu0 0.0
        %1879 = vmatprep.subr.mxu0 0.0
        %1880 = vmatpush1.msra.mxu0 0.0
        %1881 = vmatprep.subr.mxu0 0.0
        %1882 = vmatpush1.msra.mxu0 0.0
        %1883 = vmatprep.subr.mxu0 0.0
        %1884 = vmatpush1.msra.mxu0 0.0
        %1885 = vmatprep.subr.mxu0 0.0
        %1886 = vmatpush1.msra.mxu0 0.0
        %1887 = vmatprep.subr.mxu0 0.0
        %1888 = vmatpush1.msra.mxu0 0.0
        %1889 = vmatprep.subr.mxu0 0.0
        %1890 = vmatpush1.msra.mxu0 0.0
        %1891 = vmatprep.subr.mxu0 0.0
        %1892 = vmatpush1.msra.mxu0 0.0
        %1893 = vmatprep.subr.mxu0 0.0
        %1894 = vmatpush1.msra.mxu0 0.0
        %1895 = vmatprep.subr.mxu0 0.0
        %1896 = vmatpush1.msra.mxu0 0.0
        %1897 = vmatprep.mubr.f32.mxu0 0.0
        %1898 = vmatmul.mubr.f32.gmra.mrb[0].mxu0 %v1831
        %v1899 = vpop.f32.mrb[0].mxu0
        %v1900 = vadd.f32 0.0, %v1899
        %v1901 = vpop.f32.mrb[0].mxu0
        %1902 = vdwg.mxu0
        %v1903 = vadd.f32 %v1811, %v1900
        %s1904 = scalar_lea.vmem [#allocation4], 160
        %v1905 = vld [vmem:[%s1904] sm:$0xff]
        %v1906 = vld [vmem:[%s1904 + $0x8] sm:$0xff]
        %v1907 = vld [vmem:[%s1904 + $0x10] sm:$0xff]
        %v1908 = vld [vmem:[%s1904 + $0x18] sm:$0xff]
        %v1909 = vrot.slane %v1424, 5
        %v1910 = vrot.slane %v1425, 4
        %v1911 = vsel %vm1450, %v1910, %v1909
        %v1912 = vrot.slane %v1426, 3
        %v1913 = vsel %vm1453, %v1912, %v1911
        %v1914 = vrot.slane %v1427, 2
        %v1915 = vsel %vm1456, %v1914, %v1913
        %v1916 = vrot.slane %v1428, 1
        %v1917 = vsel %vm1459, %v1916, %v1915
        %v1918 = vsel %vm1462, %v1429, %v1917
        %v1919 = vrot.slane %v1430, 7
        %v1920 = vsel %vm1465, %v1919, %v1918
        %v1921 = vrot.slane %v1431, 6
        %v1922 = vsel %vm1468, %v1921, %v1920
        %v1923 = vsel %vm952, %v1922, 0
        %1925 = vmatprep.subr.mxu0 0.0
        %1926 = vmatpush1.msra.mxu0 %v1905
        %1927 = vmatprep.subr.mxu0 0.0
        %1928 = vmatpush1.msra.mxu0 %v1906
        %1929 = vmatprep.subr.mxu0 0.0
        %1930 = vmatpush1.msra.mxu0 %v1907
        %1931 = vmatprep.subr.mxu0 0.0
        %1932 = vmatpush1.msra.mxu0 %v1908
        %1933 = vmatprep.subr.mxu0 0.0
        %1934 = vmatpush1.msra.mxu0 0.0
        %1935 = vmatprep.subr.mxu0 0.0
        %1936 = vmatpush1.msra.mxu0 0.0
        %1937 = vmatprep.subr.mxu0 0.0
        %1938 = vmatpush1.msra.mxu0 0.0
        %1939 = vmatprep.subr.mxu0 0.0
        %1940 = vmatpush1.msra.mxu0 0.0
        %1941 = vmatprep.subr.mxu0 0.0
        %1942 = vmatpush1.msra.mxu0 0.0
        %1943 = vmatprep.subr.mxu0 0.0
        %1944 = vmatpush1.msra.mxu0 0.0
        %1945 = vmatprep.subr.mxu0 0.0
        %1946 = vmatpush1.msra.mxu0 0.0
        %1947 = vmatprep.subr.mxu0 0.0
        %1948 = vmatpush1.msra.mxu0 0.0
        %1949 = vmatprep.subr.mxu0 0.0
        %1950 = vmatpush1.msra.mxu0 0.0
        %1951 = vmatprep.subr.mxu0 0.0
        %1952 = vmatpush1.msra.mxu0 0.0
        %1953 = vmatprep.subr.mxu0 0.0
        %1954 = vmatpush1.msra.mxu0 0.0
        %1955 = vmatprep.subr.mxu0 0.0
        %1956 = vmatpush1.msra.mxu0 0.0
        %1957 = vmatprep.subr.mxu0 0.0
        %1958 = vmatpush1.msra.mxu0 0.0
        %1959 = vmatprep.subr.mxu0 0.0
        %1960 = vmatpush1.msra.mxu0 0.0
        %1961 = vmatprep.subr.mxu0 0.0
        %1962 = vmatpush1.msra.mxu0 0.0
        %1963 = vmatprep.subr.mxu0 0.0
        %1964 = vmatpush1.msra.mxu0 0.0
        %1965 = vmatprep.subr.mxu0 0.0
        %1966 = vmatpush1.msra.mxu0 0.0
        %1967 = vmatprep.subr.mxu0 0.0
        %1968 = vmatpush1.msra.mxu0 0.0
        %1969 = vmatprep.subr.mxu0 0.0
        %1970 = vmatpush1.msra.mxu0 0.0
        %1971 = vmatprep.subr.mxu0 0.0
        %1972 = vmatpush1.msra.mxu0 0.0
        %1973 = vmatprep.subr.mxu0 0.0
        %1974 = vmatpush1.msra.mxu0 0.0
        %1975 = vmatprep.subr.mxu0 0.0
        %1976 = vmatpush1.msra.mxu0 0.0
        %1977 = vmatprep.subr.mxu0 0.0
        %1978 = vmatpush1.msra.mxu0 0.0
        %1979 = vmatprep.subr.mxu0 0.0
        %1980 = vmatpush1.msra.mxu0 0.0
        %1981 = vmatprep.subr.mxu0 0.0
        %1982 = vmatpush1.msra.mxu0 0.0
        %1983 = vmatprep.subr.mxu0 0.0
        %1984 = vmatpush1.msra.mxu0 0.0
        %1985 = vmatprep.subr.mxu0 0.0
        %1986 = vmatpush1.msra.mxu0 0.0
        %1987 = vmatprep.subr.mxu0 0.0
        %1988 = vmatpush1.msra.mxu0 0.0
        %1989 = vmatprep.mubr.f32.mxu0 0.0
        %1990 = vmatmul.mubr.f32.gmra.mrb[0].mxu0 %v1923
        %v1991 = vpop.f32.mrb[0].mxu0
        %v1992 = vadd.f32 0.0, %v1991
        %v1993 = vpop.f32.mrb[0].mxu0
        %1994 = vdwg.mxu0
        %v1995 = vadd.f32 %v1903, %v1992
        %s1996 = scalar_lea.vmem [#allocation4], 192
        %v1997 = vld [vmem:[%s1996] sm:$0xff]
        %v1998 = vld [vmem:[%s1996 + $0x8] sm:$0xff]
        %v1999 = vld [vmem:[%s1996 + $0x10] sm:$0xff]
        %v2000 = vld [vmem:[%s1996 + $0x18] sm:$0xff]
        %v2001 = vrot.slane %v1424, 6
        %v2002 = vrot.slane %v1425, 5
        %v2003 = vsel %vm1450, %v2002, %v2001
        %v2004 = vrot.slane %v1426, 4
        %v2005 = vsel %vm1453, %v2004, %v2003
        %v2006 = vrot.slane %v1427, 3
        %v2007 = vsel %vm1456, %v2006, %v2005
        %v2008 = vrot.slane %v1428, 2
        %v2009 = vsel %vm1459, %v2008, %v2007
        %v2010 = vrot.slane %v1429, 1
        %v2011 = vsel %vm1462, %v2010, %v2009
        %v2012 = vsel %vm1465, %v1430, %v2011
        %v2013 = vrot.slane %v1431, 7
        %v2014 = vsel %vm1468, %v2013, %v2012
        %v2015 = vsel %vm952, %v2014, 0
        %2017 = vmatprep.subr.mxu0 0.0
        %2018 = vmatpush1.msra.mxu0 %v1997
        %2019 = vmatprep.subr.mxu0 0.0
        %2020 = vmatpush1.msra.mxu0 %v1998
        %2021 = vmatprep.subr.mxu0 0.0
        %2022 = vmatpush1.msra.mxu0 %v1999
        %2023 = vmatprep.subr.mxu0 0.0
        %2024 = vmatpush1.msra.mxu0 %v2000
        %2025 = vmatprep.subr.mxu0 0.0
        %2026 = vmatpush1.msra.mxu0 0.0
        %2027 = vmatprep.subr.mxu0 0.0
        %2028 = vmatpush1.msra.mxu0 0.0
        %2029 = vmatprep.subr.mxu0 0.0
        %2030 = vmatpush1.msra.mxu0 0.0
        %2031 = vmatprep.subr.mxu0 0.0
        %2032 = vmatpush1.msra.mxu0 0.0
        %2033 = vmatprep.subr.mxu0 0.0
        %2034 = vmatpush1.msra.mxu0 0.0
        %2035 = vmatprep.subr.mxu0 0.0
        %2036 = vmatpush1.msra.mxu0 0.0
        %2037 = vmatprep.subr.mxu0 0.0
        %2038 = vmatpush1.msra.mxu0 0.0
        %2039 = vmatprep.subr.mxu0 0.0
        %2040 = vmatpush1.msra.mxu0 0.0
        %2041 = vmatprep.subr.mxu0 0.0
        %2042 = vmatpush1.msra.mxu0 0.0
        %2043 = vmatprep.subr.mxu0 0.0
        %2044 = vmatpush1.msra.mxu0 0.0
        %2045 = vmatprep.subr.mxu0 0.0
        %2046 = vmatpush1.msra.mxu0 0.0
        %2047 = vmatprep.subr.mxu0 0.0
        %2048 = vmatpush1.msra.mxu0 0.0
        %2049 = vmatprep.subr.mxu0 0.0
        %2050 = vmatpush1.msra.mxu0 0.0
        %2051 = vmatprep.subr.mxu0 0.0
        %2052 = vmatpush1.msra.mxu0 0.0
        %2053 = vmatprep.subr.mxu0 0.0
        %2054 = vmatpush1.msra.mxu0 0.0
        %2055 = vmatprep.subr.mxu0 0.0
        %2056 = vmatpush1.msra.mxu0 0.0
        %2057 = vmatprep.subr.mxu0 0.0
        %2058 = vmatpush1.msra.mxu0 0.0
        %2059 = vmatprep.subr.mxu0 0.0
        %2060 = vmatpush1.msra.mxu0 0.0
        %2061 = vmatprep.subr.mxu0 0.0
        %2062 = vmatpush1.msra.mxu0 0.0
        %2063 = vmatprep.subr.mxu0 0.0
        %2064 = vmatpush1.msra.mxu0 0.0
        %2065 = vmatprep.subr.mxu0 0.0
        %2066 = vmatpush1.msra.mxu0 0.0
        %2067 = vmatprep.subr.mxu0 0.0
        %2068 = vmatpush1.msra.mxu0 0.0
        %2069 = vmatprep.subr.mxu0 0.0
        %2070 = vmatpush1.msra.mxu0 0.0
        %2071 = vmatprep.subr.mxu0 0.0
        %2072 = vmatpush1.msra.mxu0 0.0
        %2073 = vmatprep.subr.mxu0 0.0
        %2074 = vmatpush1.msra.mxu0 0.0
        %2075 = vmatprep.subr.mxu0 0.0
        %2076 = vmatpush1.msra.mxu0 0.0
        %2077 = vmatprep.subr.mxu0 0.0
        %2078 = vmatpush1.msra.mxu0 0.0
        %2079 = vmatprep.subr.mxu0 0.0
        %2080 = vmatpush1.msra.mxu0 0.0
        %2081 = vmatprep.mubr.f32.mxu0 0.0
        %2082 = vmatmul.mubr.f32.gmra.mrb[0].mxu0 %v2015
        %v2083 = vpop.f32.mrb[0].mxu0
        %v2084 = vadd.f32 0.0, %v2083
        %v2085 = vpop.f32.mrb[0].mxu0
        %2086 = vdwg.mxu0
        %v2087 = vadd.f32 %v1995, %v2084
        %s2088 = scalar_lea.vmem [#allocation4], 224
        %v2089 = vld [vmem:[%s2088] sm:$0xff]
        %v2090 = vld [vmem:[%s2088 + $0x8] sm:$0xff]
        %v2091 = vld [vmem:[%s2088 + $0x10] sm:$0xff]
        %v2092 = vld [vmem:[%s2088 + $0x18] sm:$0xff]
        %v2093 = vrot.slane %v1424, 7
        %v2094 = vrot.slane %v1425, 6
        %v2095 = vsel %vm1450, %v2094, %v2093
        %v2096 = vrot.slane %v1426, 5
        %v2097 = vsel %vm1453, %v2096, %v2095
        %v2098 = vrot.slane %v1427, 4
        %v2099 = vsel %vm1456, %v2098, %v2097
        %v2100 = vrot.slane %v1428, 3
        %v2101 = vsel %vm1459, %v2100, %v2099
        %v2102 = vrot.slane %v1429, 2
        %v2103 = vsel %vm1462, %v2102, %v2101
        %v2104 = vrot.slane %v1430, 1
        %v2105 = vsel %vm1465, %v2104, %v2103
        %v2106 = vsel %vm1468, %v1431, %v2105
        %v2107 = vsel %vm952, %v2106, 0
        %2109 = vmatprep.subr.mxu0 0.0
        %2110 = vmatpush1.msra.mxu0 %v2089
        %2111 = vmatprep.subr.mxu0 0.0
        %2112 = vmatpush1.msra.mxu0 %v2090
        %2113 = vmatprep.subr.mxu0 0.0
        %2114 = vmatpush1.msra.mxu0 %v2091
        %2115 = vmatprep.subr.mxu0 0.0
        %2116 = vmatpush1.msra.mxu0 %v2092
        %2117 = vmatprep.subr.mxu0 0.0
        %2118 = vmatpush1.msra.mxu0 0.0
        %2119 = vmatprep.subr.mxu0 0.0
        %2120 = vmatpush1.msra.mxu0 0.0
        %2121 = vmatprep.subr.mxu0 0.0
        %2122 = vmatpush1.msra.mxu0 0.0
        %2123 = vmatprep.subr.mxu0 0.0
        %2124 = vmatpush1.msra.mxu0 0.0
        %2125 = vmatprep.subr.mxu0 0.0
        %2126 = vmatpush1.msra.mxu0 0.0
        %2127 = vmatprep.subr.mxu0 0.0
        %2128 = vmatpush1.msra.mxu0 0.0
        %2129 = vmatprep.subr.mxu0 0.0
        %2130 = vmatpush1.msra.mxu0 0.0
        %2131 = vmatprep.subr.mxu0 0.0
        %2132 = vmatpush1.msra.mxu0 0.0
        %2133 = vmatprep.subr.mxu0 0.0
        %2134 = vmatpush1.msra.mxu0 0.0
        %2135 = vmatprep.subr.mxu0 0.0
        %2136 = vmatpush1.msra.mxu0 0.0
        %2137 = vmatprep.subr.mxu0 0.0
        %2138 = vmatpush1.msra.mxu0 0.0
        %2139 = vmatprep.subr.mxu0 0.0
        %2140 = vmatpush1.msra.mxu0 0.0
        %2141 = vmatprep.subr.mxu0 0.0
        %2142 = vmatpush1.msra.mxu0 0.0
        %2143 = vmatprep.subr.mxu0 0.0
        %2144 = vmatpush1.msra.mxu0 0.0
        %2145 = vmatprep.subr.mxu0 0.0
        %2146 = vmatpush1.msra.mxu0 0.0
        %2147 = vmatprep.subr.mxu0 0.0
        %2148 = vmatpush1.msra.mxu0 0.0
        %2149 = vmatprep.subr.mxu0 0.0
        %2150 = vmatpush1.msra.mxu0 0.0
        %2151 = vmatprep.subr.mxu0 0.0
        %2152 = vmatpush1.msra.mxu0 0.0
        %2153 = vmatprep.subr.mxu0 0.0
        %2154 = vmatpush1.msra.mxu0 0.0
        %2155 = vmatprep.subr.mxu0 0.0
        %2156 = vmatpush1.msra.mxu0 0.0
        %2157 = vmatprep.subr.mxu0 0.0
        %2158 = vmatpush1.msra.mxu0 0.0
        %2159 = vmatprep.subr.mxu0 0.0
        %2160 = vmatpush1.msra.mxu0 0.0
        %2161 = vmatprep.subr.mxu0 0.0
        %2162 = vmatpush1.msra.mxu0 0.0
        %2163 = vmatprep.subr.mxu0 0.0
        %2164 = vmatpush1.msra.mxu0 0.0
        %2165 = vmatprep.subr.mxu0 0.0
        %2166 = vmatpush1.msra.mxu0 0.0
        %2167 = vmatprep.subr.mxu0 0.0
        %2168 = vmatpush1.msra.mxu0 0.0
        %2169 = vmatprep.subr.mxu0 0.0
        %2170 = vmatpush1.msra.mxu0 0.0
        %2171 = vmatprep.subr.mxu0 0.0
        %2172 = vmatpush1.msra.mxu0 0.0
        %2173 = vmatprep.mubr.f32.mxu0 0.0
        %2174 = vmatmul.mubr.f32.gmra.mrb[0].mxu0 %v2107
        %v2175 = vpop.f32.mrb[0].mxu0
        %v2176 = vadd.f32 0.0, %v2175
        %v2177 = vpop.f32.mrb[0].mxu0
        %2178 = vdwg.mxu0
        %v2179 = vadd.f32 %v2087, %v2176
        %v2180 = vld [vmem:[%s8] sm:$0x1]
        %v2182 = vlaneseq
        %v2183 = vshrl.u32 %v2182, 7
        %v2184 = vsub.s32 0, %v2183
        %v2185 = vrot.slane %v2180, %v2184
        %v2187 = vadd.f32 %v2179, %v2185
        %v2188 = vmax.f32 %v2187, 0.0
        %v2189 = vld [vmem:[#allocation7] sm:$0xff]
        %v2190 = vld [vmem:[#allocation7 + $0x8] sm:$0xff]
        %v2191 = vld [vmem:[#allocation7 + $0x10] sm:$0xff]
        %v2192 = vld [vmem:[#allocation7 + $0x18] sm:$0xff]
        %v2193 = vld [vmem:[#allocation7 + $0x20] sm:$0xff]
        %v2194 = vld [vmem:[#allocation7 + $0x28] sm:$0xff]
        %v2195 = vld [vmem:[#allocation7 + $0x30] sm:$0xff]
        %v2196 = vld [vmem:[#allocation7 + $0x38] sm:$0xff]
        %v2197 = vld [vmem:[%s10] sm:$0x1]
        %v2199 = vlaneseq
        %v2200 = vshrl.u32 %v2199, 7
        %v2201 = vsub.s32 0, %v2200
        %v2202 = vrot.slane %v2197, %v2201
        %vm2204 = vcmask 523264
        %v2206 = vsel %vm2204, %v2188, 0
        %2208 = vmatprep.subr.mxu0 0.0
        %2209 = vmatpush1.msra.mxu0 %v2189
        %2210 = vmatprep.subr.mxu0 0.0
        %2211 = vmatpush1.msra.mxu0 %v2190
        %2212 = vmatprep.subr.mxu0 0.0
        %2213 = vmatpush1.msra.mxu0 %v2191
        %2214 = vmatprep.subr.mxu0 0.0
        %2215 = vmatpush1.msra.mxu0 %v2192
        %2216 = vmatprep.subr.mxu0 0.0
        %2217 = vmatpush1.msra.mxu0 %v2193
        %2218 = vmatprep.subr.mxu0 0.0
        %2219 = vmatpush1.msra.mxu0 %v2194
        %2220 = vmatprep.subr.mxu0 0.0
        %2221 = vmatpush1.msra.mxu0 %v2195
        %2222 = vmatprep.subr.mxu0 0.0
        %2223 = vmatpush1.msra.mxu0 %v2196
        %2224 = vmatprep.subr.mxu0 0.0
        %2225 = vmatpush1.msra.mxu0 0.0
        %2226 = vmatprep.subr.mxu0 0.0
        %2227 = vmatpush1.msra.mxu0 0.0
        %2228 = vmatprep.subr.mxu0 0.0
        %2229 = vmatpush1.msra.mxu0 0.0
        %2230 = vmatprep.subr.mxu0 0.0
        %2231 = vmatpush1.msra.mxu0 0.0
        %2232 = vmatprep.subr.mxu0 0.0
        %2233 = vmatpush1.msra.mxu0 0.0
        %2234 = vmatprep.subr.mxu0 0.0
        %2235 = vmatpush1.msra.mxu0 0.0
        %2236 = vmatprep.subr.mxu0 0.0
        %2237 = vmatpush1.msra.mxu0 0.0
        %2238 = vmatprep.subr.mxu0 0.0
        %2239 = vmatpush1.msra.mxu0 0.0
        %2240 = vmatprep.subr.mxu0 0.0
        %2241 = vmatpush1.msra.mxu0 0.0
        %2242 = vmatprep.subr.mxu0 0.0
        %2243 = vmatpush1.msra.mxu0 0.0
        %2244 = vmatprep.subr.mxu0 0.0
        %2245 = vmatpush1.msra.mxu0 0.0
        %2246 = vmatprep.subr.mxu0 0.0
        %2247 = vmatpush1.msra.mxu0 0.0
        %2248 = vmatprep.subr.mxu0 0.0
        %2249 = vmatpush1.msra.mxu0 0.0
        %2250 = vmatprep.subr.mxu0 0.0
        %2251 = vmatpush1.msra.mxu0 0.0
        %2252 = vmatprep.subr.mxu0 0.0
        %2253 = vmatpush1.msra.mxu0 0.0
        %2254 = vmatprep.subr.mxu0 0.0
        %2255 = vmatpush1.msra.mxu0 0.0
        %2256 = vmatprep.subr.mxu0 0.0
        %2257 = vmatpush1.msra.mxu0 0.0
        %2258 = vmatprep.subr.mxu0 0.0
        %2259 = vmatpush1.msra.mxu0 0.0
        %2260 = vmatprep.subr.mxu0 0.0
        %2261 = vmatpush1.msra.mxu0 0.0
        %2262 = vmatprep.subr.mxu0 0.0
        %2263 = vmatpush1.msra.mxu0 0.0
        %2264 = vmatprep.subr.mxu0 0.0
        %2265 = vmatpush1.msra.mxu0 0.0
        %2266 = vmatprep.subr.mxu0 0.0
        %2267 = vmatpush1.msra.mxu0 0.0
        %2268 = vmatprep.subr.mxu0 0.0
        %2269 = vmatpush1.msra.mxu0 0.0
        %2270 = vmatprep.subr.mxu0 0.0
        %2271 = vmatpush1.msra.mxu0 0.0
        %2272 = vmatprep.mubr.f32.mxu0 0.0
        %2273 = vmatmul.mubr.f32.gmra.mrb[0].mxu0 %v2206
        %v2274 = vpop.f32.mrb[0].mxu0
        %v2275 = vadd.f32 %v2202, %v2274
        %v2276 = vpop.f32.mrb[0].mxu0
        %2277 = vdwg.mxu0
        %2278 = vst [vmem:[%s410] sm:$0xff] %v2275
        %s2279 = sand.u32 %s271, 1
        %s2280 = scalar_lea.sflag [#allocation6], %s2279
        %s2281 = sand.u32 %s271, 1
        %s2282 = smul.addr %s2281, 8
        %s2283 = scalar_lea.vmem [#allocation9], %s2282
        // Predicated region
        $region73: #{tpu_custom_call.1} parent=63 // pred_check
          %p2284 = pneg %p281
        $region74: #{tpu_custom_call.1} parent=63 // pred_check_branch
          %2286 = sbr.rel (%p2284) target = $region76
        $region75: #{tpu_custom_call.1} parent=63 // pred_region
          %s2288 = ssub.s32 128, 128
          %2289 = vsyncadd %s2280, %s2288
          %s2290 = smul.addr %s27, 128
          %s2291 = scalar_lea.hbm %s11, %s2290
          %s2293 = sshll.u32 %s2283, 4
          %s2294 = int_to_ptr.vmem [resolvable:$true] %s2293
          %2296 = dma.vmem_to_hbm [thread:$0]  %s2294, 128, %s2291, %s2280
        $region76: #{tpu_custom_call.1} parent=63 // pred_fallthru
          _
      $region64: #{tpu_custom_call.1} parent=5 // pred_fallthru
        _
      %p2297 = scmp.le.s32.totalorder 2, %s22
      // Predicated region
      $region77: #{tpu_custom_call.1} parent=5 // pred_check
        %p2298 = pneg %p2297
      $region78: #{tpu_custom_call.1} parent=5 // pred_check_branch
        %2300 = sbr.rel (%p2298) target = $region80
      $region79: #{tpu_custom_call.1} parent=5 // pred_region
        %s2301 = ssub.s32 %s22, 2
        // Predicated region
        $region81: #{tpu_custom_call.1} parent=79 // pred_check
          %p2302 = pneg %p287
        $region82: #{tpu_custom_call.1} parent=79 // pred_check_branch
          %2304 = sbr.rel (%p2302) target = $region84
        $region83: #{tpu_custom_call.1} parent=79 // pred_region
          %s2305 = sand.u32 %s272, 1
          %s2306 = scalar_lea.sflag [#allocation6], %s2305
          %s2307 = sand.u32 %s272, 1
          %s2308 = smul.addr %s2307, 8
          %s2309 = scalar_lea.vmem [#allocation9], %s2308
          %2310 = dma.done %s2306, 128
        $region84: #{tpu_custom_call.1} parent=79 // pred_fallthru
          _
      $region80: #{tpu_custom_call.1} parent=5 // pred_fallthru
        _
    $region6: #{tpu_custom_call.1} parent=1 // loop_footer
      %s26 = sadd.s32 1, %s22
    $region7: #{tpu_custom_call.1} parent=1 // loop_footer_branch
      %21 = sbr.rel target = $region3
    $region8: #{tpu_custom_call.1} parent=1 // loop_exit
      _
    %2311 = vsyncpa [#allocation5], 1
    %s2312 = scalar_lea.sflag [#allocation5], 1
    %2313 = vsyncpa %s2312, 1
    %2314 = vsyncpa [#allocation8], 1
    %2315 = vsyncpa [#allocation6], 1
    %s2316 = scalar_lea.sflag [#allocation6], 1
    %2317 = vsyncpa %s2316, 1

</llo_original>
